<compile_context>
chip_gen: v5e
topology: v5e:2x2
jax: 0.10.0
libtpu: 0.0.40
codegen_flags: <defaults>
</compile_context>

<pallas_src>
import numpy as np
import jax
import jax.numpy as jnp
from jax import lax
from jax.experimental import pallas as pl
from jax.experimental.pallas import tpu as pltpu

LEAKY_SLOPE = 0.01       # InPlaceABNSync default activation: leaky_relu(0.01)
BN_EPS = 1e-5
MATMUL_DTYPE = jnp.bfloat16   # MXU operand dtype (accumulation stays f32)


# --------------------------- Pallas kernel -----------------------------------
def make_aspp_kernel(HW, Cin, matmul_dtype):
    """Per-batch fused ASPP kernel (all shape params static)."""
    inv_hw = 1.0 / HW

    def lrelu(v):
        # max(v, 0.01*v) == leaky_relu(v, 0.01); one VPU max instead of cmp+sel.
        return jnp.maximum(v, LEAKY_SLOPE * v)

    def kernel(x9_ref, wfeatT_ref, bfeat_ref, wbmT_ref,
               w1T_ref, b1_ref, wb1T_ref, bb_ref, out_ref):
        # x9_ref:    (Ktot, HW)    channels-first im2col slab (center block first)
        # wfeatT_ref:(4*Cf, Ktot)  fused branch-2..5 weights (BN folded), transposed
        # bfeat_ref: (4*Cf, 1)     fused branch-2..5 folded biases (f32)
        # wbmT_ref:  (Cout, 4*Cf)  bottleneck rows for branches 2..5, transposed
        # w1T_ref:   (Cf, Cin)     branch-1 1x1 conv (post-pool), transposed
        # b1_ref:    (Cf, 1)       branch-1 folded bias (f32)
        # wb1T_ref:  (Cout, Cf)    bottleneck rows for branch 1, transposed
        # bb_ref:    (Cout, 1)     bottleneck folded bias (f32)
        # out_ref:   (Cout, HW)    lane-dense output slab (reshapes to NCHW free)

        # ---- branches 2..5 fused: one K=Ktot feature matmul, one K=4Cf bottleneck
        featT = lrelu(
            jnp.dot(wfeatT_ref[...], x9_ref[...],
                    preferred_element_type=jnp.float32)
            + bfeat_ref[...])                                     # (4Cf, HW) f32
        accT = jnp.dot(wbmT_ref[...], featT.astype(matmul_dtype),
                       preferred_element_type=jnp.float32)        # (Cout, HW) f32

        # ---- branch 1: global average pool (MXU matmul, not an XLU reduce)
        ones_col = jnp.ones((HW, 1), dtype=matmul_dtype)
        pooled = jnp.dot(x9_ref[pl.ds(0, Cin), :], ones_col,
                         preferred_element_type=jnp.float32) * inv_hw   # (Cin, 1)
        f1 = lrelu(jnp.dot(w1T_ref[...], pooled.astype(matmul_dtype),
                           preferred_element_type=jnp.float32)
                   + b1_ref[...])                                 # (Cf, 1)
        # bilinear upsample (align_corners=True) of a 1x1 map == broadcast, so the
        # branch-1 bottleneck contribution is a single broadcast column.
        acc1 = jnp.dot(wb1T_ref[...], f1.astype(matmul_dtype),
                       preferred_element_type=jnp.float32)        # (Cout, 1)

        # ---- bottleneck bias + ABN activation; Dropout2d(0.1) identity at inference
        # TODO(synk): training-mode Dropout2d (channel dropout) not implemented.
        out_ref[...] = lrelu(accT + acc1 + bb_ref[...]).astype(out_ref.dtype)

    return kernel


# --------------------------- host-side packing --------------------------------
def fold_bn(w, bn, eps=BN_EPS):
    """Fold inference-mode BN (gamma, beta, mean, var) into a bias-free conv."""
    gamma, beta, mean, var = bn
    scale = gamma / jnp.sqrt(var + eps)
    return w * scale, beta - mean * scale


def pack_aspp_params(params, dilations, H, W, matmul_dtype=MATMUL_DTYPE):
    """Fold BN and pack all branch weights into the fused kernel operands. Do once."""
    Cin, Cf = params["w1"].shape
    Cout = params["wb"].shape[1]

    w1f, b1 = fold_bn(params["w1"], params["bn1"])
    w2f, b2 = fold_bn(params["w2"], params["bn2"])
    wdil, bdil = [], []
    for name in ("w3", "w4", "w5"):
        wf, bf = fold_bn(params[name], params["bn" + name[1]])
        wdil.append(wf)
        bdil.append(bf)
    wbf, bb = fold_bn(params["wb"], params["bnb"])

    # Off-center taps that actually touch real data (center tap always does).
    tap_blocks = []   # (dilated-branch index j, ky, kx)
    for j, d in enumerate(dilations):
        for ky in range(3):
            for kx in range(3):
                if (ky, kx) == (1, 1):
                    continue
                if abs(ky - 1) * d < H and abs(kx - 1) * d < W:
                    tap_blocks.append((j, ky, kx))

    # Fused feature weight (Ktot, 4*Cf); feature column order [f2 | f3 | f4 | f5].
    # Row block 0 = center pixel (branch 2 + center taps of 3/4/5); row block
    # 1+m = off-center tap m, zero for the branches it does not belong to.
    rows = [jnp.concatenate(
        [w2f, wdil[0][1, 1], wdil[1][1, 1], wdil[2][1, 1]], axis=1)]   # (Cin, 4Cf)
    for (j, ky, kx) in tap_blocks:
        blk = jnp.zeros((Cin, 4 * Cf), jnp.float32)
        blk = blk.at[:, (1 + j) * Cf:(2 + j) * Cf].set(wdil[j][ky, kx])
        rows.append(blk)
    wfeat = jnp.concatenate(rows, axis=0)                              # (Ktot, 4Cf)

    return {
        "tap_blocks": tap_blocks,
        "wfeatT": wfeat.T.astype(matmul_dtype),                        # (4Cf, Ktot)
        "bfeatT": jnp.concatenate([b2, bdil[0], bdil[1], bdil[2]])[:, None],  # f32
        "wbmT": wbf[Cf:, :].T.astype(matmul_dtype),                    # (Cout, 4Cf)
        "w1T": w1f.T.astype(matmul_dtype),                             # (Cf, Cin)
        "b1T": b1[:, None],                                            # (Cf, 1) f32
        "wb1T": wbf[:Cf, :].T.astype(matmul_dtype),                    # (Cout, Cf)
        "bbT": bb[:, None],                                            # (Cout, 1) f32
    }


def build_slab(x, dilations, tap_blocks, matmul_dtype):
    """NCHW input -> channels-first im2col slab (B, Ktot, H*W), center block first."""
    B, Cin, H, W = x.shape
    HW = H * W
    blocks = [x.reshape(B, Cin, HW)]
    padded = {}
    for (j, ky, kx) in tap_blocks:
        d = dilations[j]
        if d not in padded:
            padded[d] = jnp.pad(x, ((0, 0), (0, 0), (d, d), (d, d)))
        xp = padded[d]
        blocks.append(
            xp[:, :, ky * d:ky * d + H, kx * d:kx * d + W].reshape(B, Cin, HW))
    return jnp.concatenate(blocks, axis=1).astype(matmul_dtype)


# --------------------------- wrapper -------------------------------------------
def aspp_forward(x, packed, dilations):
    """x: (B, Cin, H, W) float32 NCHW. Returns (B, Cout, H, W) float32."""
    B, Cin, H, W = x.shape
    HW = H * W
    Cf = packed["w1T"].shape[0]
    Cout = packed["bbT"].shape[0]
    Ktot = packed["wfeatT"].shape[1]
    mm_dtype = packed["wfeatT"].dtype

    x9 = build_slab(x, dilations, packed["tap_blocks"], mm_dtype)   # (B, Ktot, HW)

    kernel = make_aspp_kernel(HW, Cin, mm_dtype)
    out = pl.pallas_call(
        kernel,
        out_shape=jax.ShapeDtypeStruct((B, Cout, HW), jnp.float32),
        grid=(B,),
        in_specs=[
            pl.BlockSpec((None, Ktot, HW), lambda b: (b, 0, 0)),   # im2col slab
            pl.BlockSpec((4 * Cf, Ktot), lambda b: (0, 0)),        # fused feat W^T
            pl.BlockSpec((4 * Cf, 1), lambda b: (0, 0)),           # fused feat bias
            pl.BlockSpec((Cout, 4 * Cf), lambda b: (0, 0)),        # bottleneck W^T (2..5)
            pl.BlockSpec((Cf, Cin), lambda b: (0, 0)),             # branch-1 W^T
            pl.BlockSpec((Cf, 1), lambda b: (0, 0)),               # branch-1 bias
            pl.BlockSpec((Cout, Cf), lambda b: (0, 0)),            # bottleneck W^T (1)
            pl.BlockSpec((Cout, 1), lambda b: (0, 0)),             # bottleneck bias
        ],
        out_specs=pl.BlockSpec((None, Cout, HW), lambda b: (b, 0, 0)),
        compiler_params=pltpu.CompilerParams(
            dimension_semantics=("parallel",)),
    )(x9, packed["wfeatT"], packed["bfeatT"], packed["wbmT"],
      packed["w1T"], packed["b1T"], packed["wb1T"], packed["bbT"])

    # (B, Cout, HW) -> (B, Cout, H, W): pure reshape, no transpose needed.
    return out.reshape(B, Cout, H, W)


# --------------------------- pure-JAX reference --------------------------------
def aspp_reference(x, params, dilations):
    B, Cin, H, W = x.shape
    xh = jnp.transpose(x, (0, 2, 3, 1))
    hi = lax.Precision.HIGHEST

    def bn_act(y, bn):
        gamma, beta, mean, var = bn
        yhat = (y - mean) * (gamma / jnp.sqrt(var + BN_EPS)) + beta
        return jnp.where(yhat >= 0.0, yhat, LEAKY_SLOPE * yhat)

    def dil_conv(w_hwio, d):
        return lax.conv_general_dilated(
            xh, w_hwio, window_strides=(1, 1),
            padding=((d, d), (d, d)), rhs_dilation=(d, d),
            dimension_numbers=("NHWC", "HWIO", "NHWC"), precision=hi)

    Cf = params["w1"].shape[1]
    pooled = jnp.mean(xh, axis=(1, 2))                                    # (B, Cin)
    f1 = bn_act(jnp.einsum("bc,cf->bf", pooled, params["w1"], precision=hi),
                params["bn1"])
    feat1 = jnp.broadcast_to(f1[:, None, None, :], (B, H, W, Cf))         # upsample 1x1
    feat2 = bn_act(jnp.einsum("bhwc,cf->bhwf", xh, params["w2"], precision=hi),
                   params["bn2"])
    feat3 = bn_act(dil_conv(params["w3"], dilations[0]), params["bn3"])
    feat4 = bn_act(dil_conv(params["w4"], dilations[1]), params["bn4"])
    feat5 = bn_act(dil_conv(params["w5"], dilations[2]), params["bn5"])
    cat = jnp.concatenate([feat1, feat2, feat3, feat4, feat5], axis=-1)
    bottle = bn_act(jnp.einsum("bhwc,co->bhwo", cat, params["wb"], precision=hi),
                    params["bnb"])
    return jnp.transpose(bottle, (0, 3, 1, 2))                            # NCHW


# --------------------------- demo / check --------------------------------------
if __name__ == "__main__":
    B, Cin, H, W = 2, 32, 16, 16       # batch=2, features=32, spatial=16x16
    Cf, Cout = 64, 128                 # inner_features=64, out_features=128
    dilations = (12, 24, 36)           # module defaults

    key = jax.random.PRNGKey(0)
    ks = jax.random.split(key, 12)

    def bn_params(k, c):
        k1, k2, k3, k4 = jax.random.split(k, 4)
        gamma = 1.0 + 0.1 * jax.random.normal(k1, (c,), jnp.float32)
        beta = 0.1 * jax.random.normal(k2, (c,), jnp.float32)
        mean = 0.1 * jax.random.normal(k3, (c,), jnp.float32)
        var = 1.0 + 0.5 * jax.random.uniform(k4, (c,), jnp.float32)
        return (gamma, beta, mean, var)

    x = jax.random.normal(ks[0], (B, Cin, H, W), jnp.float32)
    params = {
        "w1": 0.1 * jax.random.normal(ks[1], (Cin, Cf), jnp.float32),
        "w2": 0.1 * jax.random.normal(ks[2], (Cin, Cf), jnp.float32),
        "w3": 0.1 * jax.random.normal(ks[3], (3, 3, Cin, Cf), jnp.float32),
        "w4": 0.1 * jax.random.normal(ks[4], (3, 3, Cin, Cf), jnp.float32),
        "w5": 0.1 * jax.random.normal(ks[5], (3, 3, Cin, Cf), jnp.float32),
        "wb": 0.05 * jax.random.normal(ks[6], (5 * Cf, Cout), jnp.float32),
        "bn1": bn_params(ks[7], Cf),
        "bn2": bn_params(ks[8], Cf),
        "bn3": bn_params(ks[9], Cf),
        "bn4": bn_params(ks[10], Cf),
        "bn5": bn_params(ks[11], Cf),
        "bnb": bn_params(jax.random.PRNGKey(1), Cout),
    }

    packed = pack_aspp_params(params, dilations, H, W, MATMUL_DTYPE)  # done once
    out = aspp_forward(x, packed, dilations)
    out = jax.block_until_ready(out)
    assert out.shape == (B, Cout, H, W), out.shape
    assert out.dtype == jnp.float32

    ref = aspp_reference(x, params, dilations)
    # bf16 MXU operands (f32 accumulation / epilogue) -> looser tolerance.
    tol = 3e-2 if MATMUL_DTYPE == jnp.bfloat16 else 2e-3
    np.testing.assert_allclose(np.asarray(out), np.asarray(ref), rtol=tol, atol=tol)
    print("KERNEL_OK")
</pallas_src>

<mosaic_0001>
module attributes {stable_mosaic.version = 11 : i64} {
  func.func @kernel(%arg0: i32, %arg1: memref<1x288x256xbf16, #tpu.memory_space<vmem>>, %arg2: memref<256x288xbf16, #tpu.memory_space<vmem>>, %arg3: memref<256x1xf32, #tpu.memory_space<vmem>>, %arg4: memref<128x256xbf16, #tpu.memory_space<vmem>>, %arg5: memref<64x32xbf16, #tpu.memory_space<vmem>>, %arg6: memref<64x1xf32, #tpu.memory_space<vmem>>, %arg7: memref<128x64xbf16, #tpu.memory_space<vmem>>, %arg8: memref<128x1xf32, #tpu.memory_space<vmem>>, %arg9: memref<1x128x256xf32, #tpu.memory_space<vmem>>) attributes {dimension_semantics = [#tpu.dimension_semantics<parallel>], iteration_bounds = array<i64: 2>, scalar_prefetch = 0 : i64, scratch_operands = 0 : i64, tpu.core_type = #tpu.core_type<tc>, window_params = [{transform_indices = @transform_0, window_bounds = array<i64: 1, 288, 256>}, {pipeline_mode = #tpu.pipeline_mode<synchronous>, transform_indices = @transform_1, window_bounds = array<i64: 256, 288>}, {pipeline_mode = #tpu.pipeline_mode<synchronous>, transform_indices = @transform_2, window_bounds = array<i64: 256, 1>}, {pipeline_mode = #tpu.pipeline_mode<synchronous>, transform_indices = @transform_3, window_bounds = array<i64: 128, 256>}, {pipeline_mode = #tpu.pipeline_mode<synchronous>, transform_indices = @transform_4, window_bounds = array<i64: 64, 32>}, {pipeline_mode = #tpu.pipeline_mode<synchronous>, transform_indices = @transform_5, window_bounds = array<i64: 64, 1>}, {pipeline_mode = #tpu.pipeline_mode<synchronous>, transform_indices = @transform_6, window_bounds = array<i64: 128, 64>}, {pipeline_mode = #tpu.pipeline_mode<synchronous>, transform_indices = @transform_7, window_bounds = array<i64: 128, 1>}, {transform_indices = @transform_8, window_bounds = array<i64: 1, 128, 256>}]} {
    %c0 = arith.constant 0 : index
    %c0_0 = arith.constant 0 : index
    %0 = vector.load %arg2[%c0, %c0_0] : memref<256x288xbf16, #tpu.memory_space<vmem>>, vector<256x288xbf16>
    %c0_1 = arith.constant 0 : index
    %c0_2 = arith.constant 0 : index
    %c0_3 = arith.constant 0 : index
    %1 = vector.load %arg1[%c0_1, %c0_2, %c0_3] : memref<1x288x256xbf16, #tpu.memory_space<vmem>>, vector<1x288x256xbf16>
    %2 = vector.shape_cast %1 : vector<1x288x256xbf16> to vector<288x256xbf16>
    %cst = arith.constant dense<0.000000e+00> : vector<256x256xf32>
    %3 = tpu.matmul %0, %2, %cst {dimension_numbers = #tpu.dot_dimension_numbers<[1], [0], [0], [1], [0, 0, 1, 1], [], []>} : vector<256x288xbf16>, vector<288x256xbf16>, vector<256x256xf32> -> vector<256x256xf32>
    %c0_4 = arith.constant 0 : index
    %c0_5 = arith.constant 0 : index
    %4 = vector.load %arg3[%c0_4, %c0_5] : memref<256x1xf32, #tpu.memory_space<vmem>>, vector<256x1xf32>
    %5 = vector.broadcast %4 : vector<256x1xf32> to vector<256x256xf32>
    %6 = arith.addf %3, %5 : vector<256x256xf32>
    %cst_6 = arith.constant 0.00999999977 : f32
    %7 = vector.broadcast %cst_6 : f32 to vector<256x256xf32>
    %8 = arith.mulf %7, %6 : vector<256x256xf32>
    %9 = arith.maximumf %6, %8 : vector<256x256xf32>
    %c0_7 = arith.constant 0 : index
    %c0_8 = arith.constant 0 : index
    %10 = vector.load %arg4[%c0_7, %c0_8] : memref<128x256xbf16, #tpu.memory_space<vmem>>, vector<128x256xbf16>
    %11 = arith.truncf %9 : vector<256x256xf32> to vector<256x256xbf16>
    %cst_9 = arith.constant dense<0.000000e+00> : vector<128x256xf32>
    %12 = tpu.matmul %10, %11, %cst_9 {dimension_numbers = #tpu.dot_dimension_numbers<[1], [0], [0], [1], [0, 0, 1, 1], [], []>} : vector<128x256xbf16>, vector<256x256xbf16>, vector<128x256xf32> -> vector<128x256xf32>
    %cst_10 = arith.constant 1.000000e+00 : bf16
    %13 = vector.broadcast %cst_10 : bf16 to vector<256x1xbf16>
    %c0_11 = arith.constant 0 : index
    %c0_12 = arith.constant 0 : index
    %c0_13 = arith.constant 0 : index
    %14 = vector.load %arg1[%c0_11, %c0_12, %c0_13] : memref<1x288x256xbf16, #tpu.memory_space<vmem>>, vector<1x32x256xbf16>
    %15 = vector.shape_cast %14 : vector<1x32x256xbf16> to vector<32x256xbf16>
    %cst_14 = arith.constant dense<0.000000e+00> : vector<32x1xf32>
    %16 = tpu.matmul %15, %13, %cst_14 {dimension_numbers = #tpu.dot_dimension_numbers<[1], [0], [0], [1], [0, 0, 1, 1], [], []>} : vector<32x256xbf16>, vector<256x1xbf16>, vector<32x1xf32> -> vector<32x1xf32>
    %cst_15 = arith.constant 3.906250e-03 : f32
    %17 = vector.broadcast %cst_15 : f32 to vector<32x1xf32>
    %18 = arith.mulf %16, %17 : vector<32x1xf32>
    %c0_16 = arith.constant 0 : index
    %c0_17 = arith.constant 0 : index
    %19 = vector.load %arg5[%c0_16, %c0_17] : memref<64x32xbf16, #tpu.memory_space<vmem>>, vector<64x32xbf16>
    %20 = arith.truncf %18 : vector<32x1xf32> to vector<32x1xbf16>
    %cst_18 = arith.constant dense<0.000000e+00> : vector<64x1xf32>
    %21 = tpu.matmul %19, %20, %cst_18 {dimension_numbers = #tpu.dot_dimension_numbers<[1], [0], [0], [1], [0, 0, 1, 1], [], []>} : vector<64x32xbf16>, vector<32x1xbf16>, vector<64x1xf32> -> vector<64x1xf32>
    %c0_19 = arith.constant 0 : index
    %c0_20 = arith.constant 0 : index
    %22 = vector.load %arg6[%c0_19, %c0_20] : memref<64x1xf32, #tpu.memory_space<vmem>>, vector<64x1xf32>
    %23 = arith.addf %21, %22 : vector<64x1xf32>
    %cst_21 = arith.constant 0.00999999977 : f32
    %24 = vector.broadcast %cst_21 : f32 to vector<64x1xf32>
    %25 = arith.mulf %24, %23 : vector<64x1xf32>
    %26 = arith.maximumf %23, %25 : vector<64x1xf32>
    %c0_22 = arith.constant 0 : index
    %c0_23 = arith.constant 0 : index
    %27 = vector.load %arg7[%c0_22, %c0_23] : memref<128x64xbf16, #tpu.memory_space<vmem>>, vector<128x64xbf16>
    %28 = arith.truncf %26 : vector<64x1xf32> to vector<64x1xbf16>
    %cst_24 = arith.constant dense<0.000000e+00> : vector<128x1xf32>
    %29 = tpu.matmul %27, %28, %cst_24 {dimension_numbers = #tpu.dot_dimension_numbers<[1], [0], [0], [1], [0, 0, 1, 1], [], []>} : vector<128x64xbf16>, vector<64x1xbf16>, vector<128x1xf32> -> vector<128x1xf32>
    %30 = vector.broadcast %29 : vector<128x1xf32> to vector<128x256xf32>
    %31 = arith.addf %12, %30 : vector<128x256xf32>
    %c0_25 = arith.constant 0 : index
    %c0_26 = arith.constant 0 : index
    %32 = vector.load %arg8[%c0_25, %c0_26] : memref<128x1xf32, #tpu.memory_space<vmem>>, vector<128x1xf32>
    %33 = vector.broadcast %32 : vector<128x1xf32> to vector<128x256xf32>
    %34 = arith.addf %31, %33 : vector<128x256xf32>
    %cst_27 = arith.constant 0.00999999977 : f32
    %35 = vector.broadcast %cst_27 : f32 to vector<128x256xf32>
    %36 = arith.mulf %35, %34 : vector<128x256xf32>
    %37 = arith.maximumf %34, %36 : vector<128x256xf32>
    %c0_28 = arith.constant 0 : index
    %c0_29 = arith.constant 0 : index
    %c0_30 = arith.constant 0 : index
    %38 = vector.load %arg9[%c0_28, %c0_29, %c0_30] : memref<1x128x256xf32, #tpu.memory_space<vmem>>, vector<1x128x256xf32>
    %39 = vector.shape_cast %38 : vector<1x128x256xf32> to vector<128x256xf32>
    %40 = vector.shape_cast %37 : vector<128x256xf32> to vector<1x128x256xf32>
    tpu.vector_store %arg9[%c0_28, %c0_29, %c0_30], %40 {strides = array<i32>} : memref<1x128x256xf32, #tpu.memory_space<vmem>>, vector<1x128x256xf32>,
    return
  }
  func.func @transform_0(%arg0: i32) -> (i32, i32, i32) {
    %c0_i32 = arith.constant 0 : i32
    %c0_i32_0 = arith.constant 0 : i32
    %c0_i32_1 = arith.constant 0 : i32
    return %arg0, %c0_i32, %c0_i32_0 : i32, i32, i32
  }
  func.func @transform_1(%arg0: i32) -> (i32, i32) {
    %c0_i32 = arith.constant 0 : i32
    %c0_i32_0 = arith.constant 0 : i32
    %c0_i32_1 = arith.constant 0 : i32
    return %c0_i32, %c0_i32_0 : i32, i32
  }
  func.func @transform_2(%arg0: i32) -> (i32, i32) {
    %c0_i32 = arith.constant 0 : i32
    %c0_i32_0 = arith.constant 0 : i32
    %c0_i32_1 = arith.constant 0 : i32
    return %c0_i32, %c0_i32_0 : i32, i32
  }
  func.func @transform_3(%arg0: i32) -> (i32, i32) {
    %c0_i32 = arith.constant 0 : i32
    %c0_i32_0 = arith.constant 0 : i32
    %c0_i32_1 = arith.constant 0 : i32
    return %c0_i32, %c0_i32_0 : i32, i32
  }
  func.func @transform_4(%arg0: i32) -> (i32, i32) {
    %c0_i32 = arith.constant 0 : i32
    %c0_i32_0 = arith.constant 0 : i32
    %c0_i32_1 = arith.constant 0 : i32
    return %c0_i32, %c0_i32_0 : i32, i32
  }
  func.func @transform_5(%arg0: i32) -> (i32, i32) {
    %c0_i32 = arith.constant 0 : i32
    %c0_i32_0 = arith.constant 0 : i32
    %c0_i32_1 = arith.constant 0 : i32
    return %c0_i32, %c0_i32_0 : i32, i32
  }
  func.func @transform_6(%arg0: i32) -> (i32, i32) {
    %c0_i32 = arith.constant 0 : i32
    %c0_i32_0 = arith.constant 0 : i32
    %c0_i32_1 = arith.constant 0 : i32
    return %c0_i32, %c0_i32_0 : i32, i32
  }
  func.func @transform_7(%arg0: i32) -> (i32, i32) {
    %c0_i32 = arith.constant 0 : i32
    %c0_i32_0 = arith.constant 0 : i32
    %c0_i32_1 = arith.constant 0 : i32
    return %c0_i32, %c0_i32_0 : i32, i32
  }
  func.func @transform_8(%arg0: i32) -> (i32, i32, i32) {
    %c0_i32 = arith.constant 0 : i32
    %c0_i32_0 = arith.constant 0 : i32
    %c0_i32_1 = arith.constant 0 : i32
    return %arg0, %c0_i32, %c0_i32_0 : i32, i32, i32
  }
}

</mosaic_0001>

<llo_original>
// kernel: tpu_custom_call.1
$region0: #{tpu_custom_call.1}
  #allocation0 [shape = 'u32[]', space=smem, size = 0x4, offset = 0x4, fixed_abs, tag = 'smem constant byte address 0x4 - core index']
  #allocation1 [shape = 'u32[72,128]{1,0:T(1,128)}', space=vmem, size = 0x9000, scoped, tag = 'internal scratch']
  %s0 = inlined_call_operand.vmem [shape: bf16[2,288,256], index: 0, kind: input, shape index: {}]
  %s1 = inlined_call_operand.vmem [shape: bf16[256,288], index: 1, kind: input, shape index: {}]
  %s2 = inlined_call_operand.vmem [shape: f32[256,1], index: 2, kind: input, shape index: {}]
  %s3 = inlined_call_operand.vmem [shape: bf16[128,256], index: 3, kind: input, shape index: {}]
  %s4 = inlined_call_operand.vmem [shape: bf16[64,32], index: 4, kind: input, shape index: {}]
  %s5 = inlined_call_operand.vmem [shape: f32[64,1], index: 5, kind: input, shape index: {}]
  %s6 = inlined_call_operand.vmem [shape: bf16[128,64], index: 6, kind: input, shape index: {}]
  %s7 = inlined_call_operand.vmem [shape: f32[128,1], index: 7, kind: input, shape index: {}]
  %s8 = inlined_call_operand.hbm [shape: f32[2,128,256], index: 8, kind: output, shape index: {}]
  %s9 = sld [smem:[#allocation0]]
  $region65: #{tpu_custom_call.1} parent=0
    _
  %s11 = ssub.s32 1, %s9
  %s12 = scalar_select 0, %s11, %s9
  $region1: #{tpu_custom_call.1} parent=0
    #allocation2 [shape = 'u8[262144]{0}', space=vmem, size = 0x40000, scoped, tag = 'output window, operand 0']
    #allocation3 [shape = 's32[2]{0}', space=sflag, size = 0x8, scoped, tag = 'scoped memory for tpu_custom_call.1']
    %13 = vsyncpa [#allocation3], 0
    %s14 = scalar_lea.sflag [#allocation3], 1
    %15 = vsyncpa %s14, 0
    loop: start=0, step=1, limit=4
    $region2: #{tpu_custom_call.1} parent=1 // loop_pre_header
      _
    $region3: #{tpu_custom_call.1} parent=1 // loop_header
      %s17 = sphi 0, %s21
      %p18 = scmp.ge.s32.totalorder %s17, 4
      %s27 = sphi 0, %s29
      %s30 = sphi 0, %s27
      %s31 = sphi 0, %s30
      %s47 = sphi 0, %s31
      %s51 = sphi 0, %s51
      %s53 = sphi 0, %s51
      %s54 = sphi 0, %s53
      %s68 = sphi 0, %s54
      %s72 = sphi 0, %s72
      %s74 = sphi 0, %s72
      %s75 = sphi 0, %s74
      %s89 = sphi 0, %s75
      %s93 = sphi 0, %s93
      %s95 = sphi 0, %s93
      %s96 = sphi 0, %s95
      %s110 = sphi 0, %s96
      %s114 = sphi 0, %s114
      %s116 = sphi 0, %s114
      %s117 = sphi 0, %s116
      %s131 = sphi 0, %s117
      %s135 = sphi 0, %s135
      %s137 = sphi 0, %s135
      %s138 = sphi 0, %s137
      %s152 = sphi 0, %s138
      %s156 = sphi 0, %s156
      %s158 = sphi 0, %s156
      %s159 = sphi 0, %s158
      %s173 = sphi 0, %s159
      %s177 = sphi 0, %s177
      %s179 = sphi 0, %s177
      %s180 = sphi 0, %s179
      %s194 = sphi 0, %s180
      %s200 = sphi 0, %s202
      %s203 = sphi 0, %s200
      %s204 = sphi 0, %s203
      %s220 = sphi 0, %s204
    $region4: #{tpu_custom_call.1} parent=1 // loop_header_branch
      %20 = sbr.rel (%p18) target = $region8
    $region5: #{tpu_custom_call.1} parent=1 // loop_body
      %s22 = ssub.s32 %s17, 1
      %s23 = ssub.s32 %s17, 2
      %s24 = sadd.s32 %s17, 1
      %s25 = ssub.s32 %s17, %s24
      %p26 = scmp.eq.s32.totalorder %s25, 0
      %s28 = sadd.s32 %s27, 1
      %s29 = scalar_select %p26, %s27, %s28
      %p32 = pneg %p26
      %p33 = scmp.eq.s32.totalorder %s17, 1
      %p34 = por %p32, %p33
      %p35 = scmp.ne.s32.totalorder %s27, %s30
      %p36 = scmp.eq.s32.totalorder %s17, 0
      %p37 = por %p35, %p36
      %p38 = scmp.ne.s32.totalorder %s27, %s30
      %p39 = scmp.eq.s32.totalorder %s22, 1
      %p40 = por %p38, %p39
      %p41 = scmp.ne.s32.totalorder %s30, %s31
      %p42 = scmp.eq.s32.totalorder %s22, 0
      %p43 = por %p41, %p42
      %p44 = scmp.ne.s32.totalorder %s30, %s31
      %p45 = scmp.eq.s32.totalorder %s23, 1
      %p46 = por %p44, %p45
      %p48 = scmp.ne.s32.totalorder %s31, %s47
      %p49 = scmp.eq.s32.totalorder %s23, 0
      %p50 = por %p48, %p49
      %s52 = sadd.s32 %s51, 1
      %p55 = scmp.eq.s32.totalorder %s17, 1
      %p56 = scmp.ne.s32.totalorder %s51, %s53
      %p57 = scmp.eq.s32.totalorder %s17, 0
      %p58 = por %p56, %p57
      %p59 = scmp.ne.s32.totalorder %s51, %s53
      %p60 = scmp.eq.s32.totalorder %s22, 1
      %p61 = por %p59, %p60
      %p62 = scmp.ne.s32.totalorder %s53, %s54
      %p63 = scmp.eq.s32.totalorder %s22, 0
      %p64 = por %p62, %p63
      %p65 = scmp.ne.s32.totalorder %s53, %s54
      %p66 = scmp.eq.s32.totalorder %s23, 1
      %p67 = por %p65, %p66
      %p69 = scmp.ne.s32.totalorder %s54, %s68
      %p70 = scmp.eq.s32.totalorder %s23, 0
      %p71 = por %p69, %p70
      %s73 = sadd.s32 %s72, 1
      %p76 = scmp.eq.s32.totalorder %s17, 1
      %p77 = scmp.ne.s32.totalorder %s72, %s74
      %p78 = scmp.eq.s32.totalorder %s17, 0
      %p79 = por %p77, %p78
      %p80 = scmp.ne.s32.totalorder %s72, %s74
      %p81 = scmp.eq.s32.totalorder %s22, 1
      %p82 = por %p80, %p81
      %p83 = scmp.ne.s32.totalorder %s74, %s75
      %p84 = scmp.eq.s32.totalorder %s22, 0
      %p85 = por %p83, %p84
      %p86 = scmp.ne.s32.totalorder %s74, %s75
      %p87 = scmp.eq.s32.totalorder %s23, 1
      %p88 = por %p86, %p87
      %p90 = scmp.ne.s32.totalorder %s75, %s89
      %p91 = scmp.eq.s32.totalorder %s23, 0
      %p92 = por %p90, %p91
      %s94 = sadd.s32 %s93, 1
      %p97 = scmp.eq.s32.totalorder %s17, 1
      %p98 = scmp.ne.s32.totalorder %s93, %s95
      %p99 = scmp.eq.s32.totalorder %s17, 0
      %p100 = por %p98, %p99
      %p101 = scmp.ne.s32.totalorder %s93, %s95
      %p102 = scmp.eq.s32.totalorder %s22, 1
      %p103 = por %p101, %p102
      %p104 = scmp.ne.s32.totalorder %s95, %s96
      %p105 = scmp.eq.s32.totalorder %s22, 0
      %p106 = por %p104, %p105
      %p107 = scmp.ne.s32.totalorder %s95, %s96
      %p108 = scmp.eq.s32.totalorder %s23, 1
      %p109 = por %p107, %p108
      %p111 = scmp.ne.s32.totalorder %s96, %s110
      %p112 = scmp.eq.s32.totalorder %s23, 0
      %p113 = por %p111, %p112
      %s115 = sadd.s32 %s114, 1
      %p118 = scmp.eq.s32.totalorder %s17, 1
      %p119 = scmp.ne.s32.totalorder %s114, %s116
      %p120 = scmp.eq.s32.totalorder %s17, 0
      %p121 = por %p119, %p120
      %p122 = scmp.ne.s32.totalorder %s114, %s116
      %p123 = scmp.eq.s32.totalorder %s22, 1
      %p124 = por %p122, %p123
      %p125 = scmp.ne.s32.totalorder %s116, %s117
      %p126 = scmp.eq.s32.totalorder %s22, 0
      %p127 = por %p125, %p126
      %p128 = scmp.ne.s32.totalorder %s116, %s117
      %p129 = scmp.eq.s32.totalorder %s23, 1
      %p130 = por %p128, %p129
      %p132 = scmp.ne.s32.totalorder %s117, %s131
      %p133 = scmp.eq.s32.totalorder %s23, 0
      %p134 = por %p132, %p133
      %s136 = sadd.s32 %s135, 1
      %p139 = scmp.eq.s32.totalorder %s17, 1
      %p140 = scmp.ne.s32.totalorder %s135, %s137
      %p141 = scmp.eq.s32.totalorder %s17, 0
      %p142 = por %p140, %p141
      %p143 = scmp.ne.s32.totalorder %s135, %s137
      %p144 = scmp.eq.s32.totalorder %s22, 1
      %p145 = por %p143, %p144
      %p146 = scmp.ne.s32.totalorder %s137, %s138
      %p147 = scmp.eq.s32.totalorder %s22, 0
      %p148 = por %p146, %p147
      %p149 = scmp.ne.s32.totalorder %s137, %s138
      %p150 = scmp.eq.s32.totalorder %s23, 1
      %p151 = por %p149, %p150
      %p153 = scmp.ne.s32.totalorder %s138, %s152
      %p154 = scmp.eq.s32.totalorder %s23, 0
      %p155 = por %p153, %p154
      %s157 = sadd.s32 %s156, 1
      %p160 = scmp.eq.s32.totalorder %s17, 1
      %p161 = scmp.ne.s32.totalorder %s156, %s158
      %p162 = scmp.eq.s32.totalorder %s17, 0
      %p163 = por %p161, %p162
      %p164 = scmp.ne.s32.totalorder %s156, %s158
      %p165 = scmp.eq.s32.totalorder %s22, 1
      %p166 = por %p164, %p165
      %p167 = scmp.ne.s32.totalorder %s158, %s159
      %p168 = scmp.eq.s32.totalorder %s22, 0
      %p169 = por %p167, %p168
      %p170 = scmp.ne.s32.totalorder %s158, %s159
      %p171 = scmp.eq.s32.totalorder %s23, 1
      %p172 = por %p170, %p171
      %p174 = scmp.ne.s32.totalorder %s159, %s173
      %p175 = scmp.eq.s32.totalorder %s23, 0
      %p176 = por %p174, %p175
      %s178 = sadd.s32 %s177, 1
      %p181 = scmp.eq.s32.totalorder %s17, 1
      %p182 = scmp.ne.s32.totalorder %s177, %s179
      %p183 = scmp.eq.s32.totalorder %s17, 0
      %p184 = por %p182, %p183
      %p185 = scmp.ne.s32.totalorder %s177, %s179
      %p186 = scmp.eq.s32.totalorder %s22, 1
      %p187 = por %p185, %p186
      %p188 = scmp.ne.s32.totalorder %s179, %s180
      %p189 = scmp.eq.s32.totalorder %s22, 0
      %p190 = por %p188, %p189
      %p191 = scmp.ne.s32.totalorder %s179, %s180
      %p192 = scmp.eq.s32.totalorder %s23, 1
      %p193 = por %p191, %p192
      %p195 = scmp.ne.s32.totalorder %s180, %s194
      %p196 = scmp.eq.s32.totalorder %s23, 0
      %p197 = por %p195, %p196
      %s198 = ssub.s32 %s17, %s24
      %p199 = scmp.eq.s32.totalorder %s198, 0
      %s201 = sadd.s32 %s200, 1
      %s202 = scalar_select %p199, %s200, %s201
      %p205 = pneg %p199
      %p206 = scmp.eq.s32.totalorder %s17, 1
      %p207 = por %p205, %p206
      %p208 = scmp.ne.s32.totalorder %s200, %s203
      %p209 = scmp.eq.s32.totalorder %s17, 0
      %p210 = por %p208, %p209
      %p211 = scmp.ne.s32.totalorder %s200, %s203
      %p212 = scmp.eq.s32.totalorder %s22, 1
      %p213 = por %p211, %p212
      %p214 = scmp.ne.s32.totalorder %s203, %s204
      %p215 = scmp.eq.s32.totalorder %s22, 0
      %p216 = por %p214, %p215
      %p217 = scmp.ne.s32.totalorder %s203, %s204
      %p218 = scmp.eq.s32.totalorder %s23, 1
      %p219 = por %p217, %p218
      %p221 = scmp.ne.s32.totalorder %s204, %s220
      %p222 = scmp.eq.s32.totalorder %s23, 0
      %p223 = por %p221, %p222
      %p224 = scmp.le.s32.totalorder 1, %s17
      %p225 = scmp.lt.s32.totalorder %s17, 3
      %p226 = pnand %p224, %p225
      %p227 = pneg %p226
      // Predicated region
      $region9: #{tpu_custom_call.1} parent=5 // pred_check
        _
      $region10: #{tpu_custom_call.1} parent=5 // pred_check_branch
        %229 = sbr.rel (%p226) target = $region12
      $region11: #{tpu_custom_call.1} parent=5 // pred_region
        %s230 = ssub.s32 %s17, 1
        // Predicated region
        $region13: #{tpu_custom_call.1} parent=11 // pred_check
          %p231 = pneg %p64
        $region14: #{tpu_custom_call.1} parent=11 // pred_check_branch
          %233 = sbr.rel (%p231) target = $region16
        $region15: #{tpu_custom_call.1} parent=11 // pred_region
          _
        $region16: #{tpu_custom_call.1} parent=11 // pred_fallthru
          _
        // Predicated region
        $region17: #{tpu_custom_call.1} parent=11 // pred_check
          %p234 = pneg %p85
        $region18: #{tpu_custom_call.1} parent=11 // pred_check_branch
          %236 = sbr.rel (%p234) target = $region20
        $region19: #{tpu_custom_call.1} parent=11 // pred_region
          _
        $region20: #{tpu_custom_call.1} parent=11 // pred_fallthru
          _
        // Predicated region
        $region21: #{tpu_custom_call.1} parent=11 // pred_check
          %p237 = pneg %p106
        $region22: #{tpu_custom_call.1} parent=11 // pred_check_branch
          %239 = sbr.rel (%p237) target = $region24
        $region23: #{tpu_custom_call.1} parent=11 // pred_region
          _
        $region24: #{tpu_custom_call.1} parent=11 // pred_fallthru
          _
        // Predicated region
        $region25: #{tpu_custom_call.1} parent=11 // pred_check
          %p240 = pneg %p127
        $region26: #{tpu_custom_call.1} parent=11 // pred_check_branch
          %242 = sbr.rel (%p240) target = $region28
        $region27: #{tpu_custom_call.1} parent=11 // pred_region
          _
        $region28: #{tpu_custom_call.1} parent=11 // pred_fallthru
          _
        // Predicated region
        $region29: #{tpu_custom_call.1} parent=11 // pred_check
          %p243 = pneg %p148
        $region30: #{tpu_custom_call.1} parent=11 // pred_check_branch
          %245 = sbr.rel (%p243) target = $region32
        $region31: #{tpu_custom_call.1} parent=11 // pred_region
          _
        $region32: #{tpu_custom_call.1} parent=11 // pred_fallthru
          _
        // Predicated region
        $region33: #{tpu_custom_call.1} parent=11 // pred_check
          %p246 = pneg %p169
        $region34: #{tpu_custom_call.1} parent=11 // pred_check_branch
          %248 = sbr.rel (%p246) target = $region36
        $region35: #{tpu_custom_call.1} parent=11 // pred_region
          _
        $region36: #{tpu_custom_call.1} parent=11 // pred_fallthru
          _
        // Predicated region
        $region37: #{tpu_custom_call.1} parent=11 // pred_check
          %p249 = pneg %p190
        $region38: #{tpu_custom_call.1} parent=11 // pred_check_branch
          %251 = sbr.rel (%p249) target = $region40
        $region39: #{tpu_custom_call.1} parent=11 // pred_region
          _
        $region40: #{tpu_custom_call.1} parent=11 // pred_fallthru
          _
      $region12: #{tpu_custom_call.1} parent=5 // pred_fallthru
        _
      %p252 = scmp.lt.s32.totalorder %s17, 2
      // Predicated region
      $region41: #{tpu_custom_call.1} parent=5 // pred_check
        %p253 = pneg %p252
      $region42: #{tpu_custom_call.1} parent=5 // pred_check_branch
        %255 = sbr.rel (%p253) target = $region44
      $region43: #{tpu_custom_call.1} parent=5 // pred_region
        // Predicated region
        $region45: #{tpu_custom_call.1} parent=43 // pred_check
          %p256 = pneg %p37
        $region46: #{tpu_custom_call.1} parent=43 // pred_check_branch
          %258 = sbr.rel (%p256) target = $region48
        $region47: #{tpu_custom_call.1} parent=43 // pred_region
          %p259 = scmp.lt.s32.totalorder %s17, 1
          %s260 = scalar_select %p259, %s17, 1
          %s261 = smul.addr %s260, 72
          %s262 = smul.addr %s261, 4
          %s263 = scalar_lea.vmem %s0, %s262
        $region48: #{tpu_custom_call.1} parent=43 // pred_fallthru
          _
      $region44: #{tpu_custom_call.1} parent=5 // pred_fallthru
        _
      %p264 = scmp.le.s32.totalorder 1, %s17
      %p265 = scmp.lt.s32.totalorder %s17, 3
      %p266 = pnand %p264, %p265
      %p267 = pneg %p266
      // Predicated region
      $region49: #{tpu_custom_call.1} parent=5 // pred_check
        _
      $region50: #{tpu_custom_call.1} parent=5 // pred_check_branch
        %269 = sbr.rel (%p266) target = $region52
      $region51: #{tpu_custom_call.1} parent=5 // pred_region
        %s270 = ssub.s32 %s17, 1
        %p271 = scmp.lt.s32.totalorder %s22, 1
        %s272 = scalar_select %p271, %s22, 1
        %s273 = smul.addr %s272, 72
        %s274 = smul.addr %s273, 4
        %s275 = scalar_lea.vmem %s0, %s274
        %p276 = pneg %p43
        %p277 = pneg %p40
        %p278 = pneg %p64
        %p279 = pneg %p61
        %p280 = pneg %p85
        %p281 = pneg %p82
        %p282 = pneg %p106
        %p283 = pneg %p103
        %p284 = pneg %p127
        %p285 = pneg %p124
        %p286 = pneg %p148
        %p287 = pneg %p145
        %p288 = pneg %p169
        %p289 = pneg %p166
        %p290 = pneg %p190
        %p291 = pneg %p187
        %p292 = pneg %p216
        %p293 = pneg %p213
        %s294 = sand.u32 %s203, 1
        %s295 = scalar_lea.sflag [#allocation3], %s294
        %s296 = sand.u32 %s203, 1
        %s297 = smul.addr %s296, 256
        %s298 = scalar_lea.vmem [#allocation2], %s297
        %p299 = scmp.lt.s32.totalorder %s22, 1
        %s300 = scalar_select %p299, %s22, 1
        %s301 = smul.addr %s300, 72
        %s302 = smul.addr %s301, 4
        %s303 = scalar_lea.vmem %s0, %s302
        %v306 = vld [vmem:[%s1] sm:$0xff]
        %v307 = vld [vmem:[%s1 + $0x8] sm:$0xf]
        %v308 = vld [vmem:[%s1 + $0xc] sm:$0xff]
        %v309 = vld [vmem:[%s1 + $0x14] sm:$0xf]
        %v310 = vld [vmem:[%s1 + $0x18] sm:$0xff]
        %v311 = vld [vmem:[%s1 + $0x20] sm:$0xf]
        %v312 = vld [vmem:[%s1 + $0x24] sm:$0xff]
        %v313 = vld [vmem:[%s1 + $0x2c] sm:$0xf]
        %v314 = vld [vmem:[%s1 + $0x30] sm:$0xff]
        %v315 = vld [vmem:[%s1 + $0x38] sm:$0xf]
        %v316 = vld [vmem:[%s1 + $0x3c] sm:$0xff]
        %v317 = vld [vmem:[%s1 + $0x44] sm:$0xf]
        %v318 = vld [vmem:[%s1 + $0x48] sm:$0xff]
        %v319 = vld [vmem:[%s1 + $0x50] sm:$0xf]
        %v320 = vld [vmem:[%s1 + $0x54] sm:$0xff]
        %v321 = vld [vmem:[%s1 + $0x5c] sm:$0xf]
        %v322 = vld [vmem:[%s1 + $0x60] sm:$0xff]
        %v323 = vld [vmem:[%s1 + $0x68] sm:$0xf]
        %v324 = vld [vmem:[%s1 + $0x6c] sm:$0xff]
        %v325 = vld [vmem:[%s1 + $0x74] sm:$0xf]
        %v326 = vld [vmem:[%s1 + $0x78] sm:$0xff]
        %v327 = vld [vmem:[%s1 + $0x80] sm:$0xf]
        %v328 = vld [vmem:[%s1 + $0x84] sm:$0xff]
        %v329 = vld [vmem:[%s1 + $0x8c] sm:$0xf]
        %v330 = vld [vmem:[%s1 + $0x90] sm:$0xff]
        %v331 = vld [vmem:[%s1 + $0x98] sm:$0xf]
        %v332 = vld [vmem:[%s1 + $0x9c] sm:$0xff]
        %v333 = vld [vmem:[%s1 + $0xa4] sm:$0xf]
        %v334 = vld [vmem:[%s1 + $0xa8] sm:$0xff]
        %v335 = vld [vmem:[%s1 + $0xb0] sm:$0xf]
        %v336 = vld [vmem:[%s1 + $0xb4] sm:$0xff]
        %v337 = vld [vmem:[%s1 + $0xbc] sm:$0xf]
        %v338 = vld [vmem:[%s1 + $0xc0] sm:$0xff]
        %v339 = vld [vmem:[%s1 + $0xc8] sm:$0xf]
        %v340 = vld [vmem:[%s1 + $0xcc] sm:$0xff]
        %v341 = vld [vmem:[%s1 + $0xd4] sm:$0xf]
        %v342 = vld [vmem:[%s1 + $0xd8] sm:$0xff]
        %v343 = vld [vmem:[%s1 + $0xe0] sm:$0xf]
        %v344 = vld [vmem:[%s1 + $0xe4] sm:$0xff]
        %v345 = vld [vmem:[%s1 + $0xec] sm:$0xf]
        %v346 = vld [vmem:[%s1 + $0xf0] sm:$0xff]
        %v347 = vld [vmem:[%s1 + $0xf8] sm:$0xf]
        %v348 = vld [vmem:[%s1 + $0xfc] sm:$0xff]
        %v349 = vld [vmem:[%s1 + $0x104] sm:$0xf]
        %v350 = vld [vmem:[%s1 + $0x108] sm:$0xff]
        %v351 = vld [vmem:[%s1 + $0x110] sm:$0xf]
        %v352 = vld [vmem:[%s1 + $0x114] sm:$0xff]
        %v353 = vld [vmem:[%s1 + $0x11c] sm:$0xf]
        %v354 = vld [vmem:[%s1 + $0x120] sm:$0xff]
        %v355 = vld [vmem:[%s1 + $0x128] sm:$0xf]
        %v356 = vld [vmem:[%s1 + $0x12c] sm:$0xff]
        %v357 = vld [vmem:[%s1 + $0x134] sm:$0xf]
        %v358 = vld [vmem:[%s1 + $0x138] sm:$0xff]
        %v359 = vld [vmem:[%s1 + $0x140] sm:$0xf]
        %v360 = vld [vmem:[%s1 + $0x144] sm:$0xff]
        %v361 = vld [vmem:[%s1 + $0x14c] sm:$0xf]
        %v362 = vld [vmem:[%s1 + $0x150] sm:$0xff]
        %v363 = vld [vmem:[%s1 + $0x158] sm:$0xf]
        %v364 = vld [vmem:[%s1 + $0x15c] sm:$0xff]
        %v365 = vld [vmem:[%s1 + $0x164] sm:$0xf]
        %v366 = vld [vmem:[%s1 + $0x168] sm:$0xff]
        %v367 = vld [vmem:[%s1 + $0x170] sm:$0xf]
        %v368 = vld [vmem:[%s1 + $0x174] sm:$0xff]
        %v369 = vld [vmem:[%s1 + $0x17c] sm:$0xf]
        %v370 = vld [vmem:[%s303] sm:$0xff]
        %v371 = vld [vmem:[%s303 + $0x8] sm:$0xff]
        %v372 = vld [vmem:[%s303 + $0x10] sm:$0xff]
        %v373 = vld [vmem:[%s303 + $0x18] sm:$0xff]
        %v374 = vld [vmem:[%s303 + $0x20] sm:$0xff]
        %v375 = vld [vmem:[%s303 + $0x28] sm:$0xff]
        %v376 = vld [vmem:[%s303 + $0x30] sm:$0xff]
        %v377 = vld [vmem:[%s303 + $0x38] sm:$0xff]
        %v378 = vld [vmem:[%s303 + $0x40] sm:$0xff]
        %v379 = vld [vmem:[%s303 + $0x48] sm:$0xff]
        %v380 = vld [vmem:[%s303 + $0x50] sm:$0xff]
        %v381 = vld [vmem:[%s303 + $0x58] sm:$0xff]
        %v382 = vld [vmem:[%s303 + $0x60] sm:$0xff]
        %v383 = vld [vmem:[%s303 + $0x68] sm:$0xff]
        %v384 = vld [vmem:[%s303 + $0x70] sm:$0xff]
        %v385 = vld [vmem:[%s303 + $0x78] sm:$0xff]
        %v386 = vld [vmem:[%s303 + $0x80] sm:$0xff]
        %v387 = vld [vmem:[%s303 + $0x88] sm:$0xff]
        %v388 = vld [vmem:[%s303 + $0x90] sm:$0xff]
        %v389 = vld [vmem:[%s303 + $0x98] sm:$0xff]
        %v390 = vld [vmem:[%s303 + $0xa0] sm:$0xff]
        %v391 = vld [vmem:[%s303 + $0xa8] sm:$0xff]
        %v392 = vld [vmem:[%s303 + $0xb0] sm:$0xff]
        %v393 = vld [vmem:[%s303 + $0xb8] sm:$0xff]
        %v394 = vld [vmem:[%s303 + $0xc0] sm:$0xff]
        %v395 = vld [vmem:[%s303 + $0xc8] sm:$0xff]
        %v396 = vld [vmem:[%s303 + $0xd0] sm:$0xff]
        %v397 = vld [vmem:[%s303 + $0xd8] sm:$0xff]
        %v398 = vld [vmem:[%s303 + $0xe0] sm:$0xff]
        %v399 = vld [vmem:[%s303 + $0xe8] sm:$0xff]
        %v400 = vld [vmem:[%s303 + $0xf0] sm:$0xff]
        %v401 = vld [vmem:[%s303 + $0xf8] sm:$0xff]
        %v402 = vld [vmem:[%s303 + $0x100] sm:$0xff]
        %v403 = vld [vmem:[%s303 + $0x108] sm:$0xff]
        %v404 = vld [vmem:[%s303 + $0x110] sm:$0xff]
        %v405 = vld [vmem:[%s303 + $0x118] sm:$0xff]
        %v406 = vld [vmem:[%s2] sm:$0xff]
        %v407 = vld [vmem:[%s2 + $0x8] sm:$0xff]
        %v408 = vld [vmem:[%s2 + $0x10] sm:$0xff]
        %v409 = vld [vmem:[%s2 + $0x18] sm:$0xff]
        %v410 = vld [vmem:[%s2 + $0x20] sm:$0xff]
        %v411 = vld [vmem:[%s2 + $0x28] sm:$0xff]
        %v412 = vld [vmem:[%s2 + $0x30] sm:$0xff]
        %v413 = vld [vmem:[%s2 + $0x38] sm:$0xff]
        %v414 = vld [vmem:[%s2 + $0x40] sm:$0xff]
        %v415 = vld [vmem:[%s2 + $0x48] sm:$0xff]
        %v416 = vld [vmem:[%s2 + $0x50] sm:$0xff]
        %v417 = vld [vmem:[%s2 + $0x58] sm:$0xff]
        %v418 = vld [vmem:[%s2 + $0x60] sm:$0xff]
        %v419 = vld [vmem:[%s2 + $0x68] sm:$0xff]
        %v420 = vld [vmem:[%s2 + $0x70] sm:$0xff]
        %v421 = vld [vmem:[%s2 + $0x78] sm:$0xff]
        %v422 = vld [vmem:[%s2 + $0x80] sm:$0xff]
        %v423 = vld [vmem:[%s2 + $0x88] sm:$0xff]
        %v424 = vld [vmem:[%s2 + $0x90] sm:$0xff]
        %v425 = vld [vmem:[%s2 + $0x98] sm:$0xff]
        %v426 = vld [vmem:[%s2 + $0xa0] sm:$0xff]
        %v427 = vld [vmem:[%s2 + $0xa8] sm:$0xff]
        %v428 = vld [vmem:[%s2 + $0xb0] sm:$0xff]
        %v429 = vld [vmem:[%s2 + $0xb8] sm:$0xff]
        %v430 = vld [vmem:[%s2 + $0xc0] sm:$0xff]
        %v431 = vld [vmem:[%s2 + $0xc8] sm:$0xff]
        %v432 = vld [vmem:[%s2 + $0xd0] sm:$0xff]
        %v433 = vld [vmem:[%s2 + $0xd8] sm:$0xff]
        %v434 = vld [vmem:[%s2 + $0xe0] sm:$0xff]
        %v435 = vld [vmem:[%s2 + $0xe8] sm:$0xff]
        %v436 = vld [vmem:[%s2 + $0xf0] sm:$0xff]
        %v437 = vld [vmem:[%s2 + $0xf8] sm:$0xff]
        %439 = vset.pattern.permute.xlu0 0
        %440 = vperm.xlu0 %439, %v406
        %v441 = vpop.permute.xlu0 %440
        %444 = vset.pattern.permute.xlu0 0
        %445 = vperm.xlu0 %444, %v407
        %v446 = vpop.permute.xlu0 %445
        %449 = vset.pattern.permute.xlu0 0
        %450 = vperm.xlu0 %449, %v408
        %v451 = vpop.permute.xlu0 %450
        %454 = vset.pattern.permute.xlu0 0
        %455 = vperm.xlu0 %454, %v409
        %v456 = vpop.permute.xlu0 %455
        %459 = vset.pattern.permute.xlu0 0
        %460 = vperm.xlu0 %459, %v410
        %v461 = vpop.permute.xlu0 %460
        %464 = vset.pattern.permute.xlu0 0
        %465 = vperm.xlu0 %464, %v411
        %v466 = vpop.permute.xlu0 %465
        %469 = vset.pattern.permute.xlu0 0
        %470 = vperm.xlu0 %469, %v412
        %v471 = vpop.permute.xlu0 %470
        %474 = vset.pattern.permute.xlu0 0
        %475 = vperm.xlu0 %474, %v413
        %v476 = vpop.permute.xlu0 %475
        %479 = vset.pattern.permute.xlu0 0
        %480 = vperm.xlu0 %479, %v414
        %v481 = vpop.permute.xlu0 %480
        %484 = vset.pattern.permute.xlu0 0
        %485 = vperm.xlu0 %484, %v415
        %v486 = vpop.permute.xlu0 %485
        %489 = vset.pattern.permute.xlu0 0
        %490 = vperm.xlu0 %489, %v416
        %v491 = vpop.permute.xlu0 %490
        %494 = vset.pattern.permute.xlu0 0
        %495 = vperm.xlu0 %494, %v417
        %v496 = vpop.permute.xlu0 %495
        %499 = vset.pattern.permute.xlu0 0
        %500 = vperm.xlu0 %499, %v418
        %v501 = vpop.permute.xlu0 %500
        %504 = vset.pattern.permute.xlu0 0
        %505 = vperm.xlu0 %504, %v419
        %v506 = vpop.permute.xlu0 %505
        %509 = vset.pattern.permute.xlu0 0
        %510 = vperm.xlu0 %509, %v420
        %v511 = vpop.permute.xlu0 %510
        %514 = vset.pattern.permute.xlu0 0
        %515 = vperm.xlu0 %514, %v421
        %v516 = vpop.permute.xlu0 %515
        %519 = vset.pattern.permute.xlu0 0
        %520 = vperm.xlu0 %519, %v422
        %v521 = vpop.permute.xlu0 %520
        %524 = vset.pattern.permute.xlu0 0
        %525 = vperm.xlu0 %524, %v423
        %v526 = vpop.permute.xlu0 %525
        %529 = vset.pattern.permute.xlu0 0
        %530 = vperm.xlu0 %529, %v424
        %v531 = vpop.permute.xlu0 %530
        %534 = vset.pattern.permute.xlu0 0
        %535 = vperm.xlu0 %534, %v425
        %v536 = vpop.permute.xlu0 %535
        %539 = vset.pattern.permute.xlu0 0
        %540 = vperm.xlu0 %539, %v426
        %v541 = vpop.permute.xlu0 %540
        %544 = vset.pattern.permute.xlu0 0
        %545 = vperm.xlu0 %544, %v427
        %v546 = vpop.permute.xlu0 %545
        %549 = vset.pattern.permute.xlu0 0
        %550 = vperm.xlu0 %549, %v428
        %v551 = vpop.permute.xlu0 %550
        %554 = vset.pattern.permute.xlu0 0
        %555 = vperm.xlu0 %554, %v429
        %v556 = vpop.permute.xlu0 %555
        %559 = vset.pattern.permute.xlu0 0
        %560 = vperm.xlu0 %559, %v430
        %v561 = vpop.permute.xlu0 %560
        %564 = vset.pattern.permute.xlu0 0
        %565 = vperm.xlu0 %564, %v431
        %v566 = vpop.permute.xlu0 %565
        %569 = vset.pattern.permute.xlu0 0
        %570 = vperm.xlu0 %569, %v432
        %v571 = vpop.permute.xlu0 %570
        %574 = vset.pattern.permute.xlu0 0
        %575 = vperm.xlu0 %574, %v433
        %v576 = vpop.permute.xlu0 %575
        %579 = vset.pattern.permute.xlu0 0
        %580 = vperm.xlu0 %579, %v434
        %v581 = vpop.permute.xlu0 %580
        %584 = vset.pattern.permute.xlu0 0
        %585 = vperm.xlu0 %584, %v435
        %v586 = vpop.permute.xlu0 %585
        %589 = vset.pattern.permute.xlu0 0
        %590 = vperm.xlu0 %589, %v436
        %v591 = vpop.permute.xlu0 %590
        %594 = vset.pattern.permute.xlu0 0
        %595 = vperm.xlu0 %594, %v437
        %v596 = vpop.permute.xlu0 %595
        %v662 = vunpack.c.l.b16 %v306
        %v663 = vunpack.c.h.b16 %v306
        %v664 = vunpack.c.l.b16 %v307
        %v665 = vunpack.c.l.b16 %v308
        %v666 = vunpack.c.h.b16 %v308
        %v667 = vunpack.c.l.b16 %v309
        %v668 = vunpack.c.l.b16 %v310
        %v669 = vunpack.c.h.b16 %v310
        %v670 = vunpack.c.l.b16 %v311
        %v671 = vunpack.c.l.b16 %v312
        %v672 = vunpack.c.h.b16 %v312
        %v673 = vunpack.c.l.b16 %v313
        %v674 = vunpack.c.l.b16 %v314
        %v675 = vunpack.c.h.b16 %v314
        %v676 = vunpack.c.l.b16 %v315
        %v677 = vunpack.c.l.b16 %v316
        %v678 = vunpack.c.h.b16 %v316
        %v679 = vunpack.c.l.b16 %v317
        %v680 = vunpack.c.l.b16 %v318
        %v681 = vunpack.c.h.b16 %v318
        %v682 = vunpack.c.l.b16 %v319
        %v683 = vunpack.c.l.b16 %v320
        %v684 = vunpack.c.h.b16 %v320
        %v685 = vunpack.c.l.b16 %v321
        %v686 = vunpack.c.l.b16 %v322
        %v687 = vunpack.c.h.b16 %v322
        %v688 = vunpack.c.l.b16 %v323
        %v689 = vunpack.c.l.b16 %v324
        %v690 = vunpack.c.h.b16 %v324
        %v691 = vunpack.c.l.b16 %v325
        %v692 = vunpack.c.l.b16 %v326
        %v693 = vunpack.c.h.b16 %v326
        %v694 = vunpack.c.l.b16 %v327
        %v695 = vunpack.c.l.b16 %v328
        %v696 = vunpack.c.h.b16 %v328
        %v697 = vunpack.c.l.b16 %v329
        %v698 = vunpack.c.l.b16 %v330
        %v699 = vunpack.c.h.b16 %v330
        %v700 = vunpack.c.l.b16 %v331
        %v701 = vunpack.c.l.b16 %v332
        %v702 = vunpack.c.h.b16 %v332
        %v703 = vunpack.c.l.b16 %v333
        %v704 = vunpack.c.l.b16 %v334
        %v705 = vunpack.c.h.b16 %v334
        %v706 = vunpack.c.l.b16 %v335
        %v707 = vunpack.c.l.b16 %v336
        %v708 = vunpack.c.h.b16 %v336
        %v709 = vunpack.c.l.b16 %v337
        %v710 = vunpack.c.l.b16 %v338
        %v711 = vunpack.c.h.b16 %v338
        %v712 = vunpack.c.l.b16 %v339
        %v713 = vunpack.c.l.b16 %v340
        %v714 = vunpack.c.h.b16 %v340
        %v715 = vunpack.c.l.b16 %v341
        %v716 = vunpack.c.l.b16 %v342
        %v717 = vunpack.c.h.b16 %v342
        %v718 = vunpack.c.l.b16 %v343
        %v719 = vunpack.c.l.b16 %v344
        %v720 = vunpack.c.h.b16 %v344
        %v721 = vunpack.c.l.b16 %v345
        %v722 = vunpack.c.l.b16 %v346
        %v723 = vunpack.c.h.b16 %v346
        %v724 = vunpack.c.l.b16 %v347
        %v725 = vunpack.c.l.b16 %v348
        %v726 = vunpack.c.h.b16 %v348
        %v727 = vunpack.c.l.b16 %v349
        %v728 = vunpack.c.l.b16 %v350
        %v729 = vunpack.c.h.b16 %v350
        %v730 = vunpack.c.l.b16 %v351
        %v731 = vunpack.c.l.b16 %v352
        %v732 = vunpack.c.h.b16 %v352
        %v733 = vunpack.c.l.b16 %v353
        %v734 = vunpack.c.l.b16 %v354
        %v735 = vunpack.c.h.b16 %v354
        %v736 = vunpack.c.l.b16 %v355
        %v737 = vunpack.c.l.b16 %v356
        %v738 = vunpack.c.h.b16 %v356
        %v739 = vunpack.c.l.b16 %v357
        %v740 = vunpack.c.l.b16 %v358
        %v741 = vunpack.c.h.b16 %v358
        %v742 = vunpack.c.l.b16 %v359
        %v743 = vunpack.c.l.b16 %v360
        %v744 = vunpack.c.h.b16 %v360
        %v745 = vunpack.c.l.b16 %v361
        %v746 = vunpack.c.l.b16 %v362
        %v747 = vunpack.c.h.b16 %v362
        %v748 = vunpack.c.l.b16 %v363
        %v749 = vunpack.c.l.b16 %v364
        %v750 = vunpack.c.h.b16 %v364
        %v751 = vunpack.c.l.b16 %v365
        %v752 = vunpack.c.l.b16 %v366
        %v753 = vunpack.c.h.b16 %v366
        %v754 = vunpack.c.l.b16 %v367
        %v755 = vunpack.c.l.b16 %v368
        %v756 = vunpack.c.h.b16 %v368
        %v757 = vunpack.c.l.b16 %v369
        %v758 = vpack.c.b16 %v665, %v662
        %v759 = vpack.c.b16 %v666, %v663
        %v760 = vpack.c.b16 %v667, %v664
        %v761 = vpack.c.b16 %v671, %v668
        %v762 = vpack.c.b16 %v672, %v669
        %v763 = vpack.c.b16 %v673, %v670
        %v764 = vpack.c.b16 %v677, %v674
        %v765 = vpack.c.b16 %v678, %v675
        %v766 = vpack.c.b16 %v679, %v676
        %v767 = vpack.c.b16 %v683, %v680
        %v768 = vpack.c.b16 %v684, %v681
        %v769 = vpack.c.b16 %v685, %v682
        %v770 = vpack.c.b16 %v689, %v686
        %v771 = vpack.c.b16 %v690, %v687
        %v772 = vpack.c.b16 %v691, %v688
        %v773 = vpack.c.b16 %v695, %v692
        %v774 = vpack.c.b16 %v696, %v693
        %v775 = vpack.c.b16 %v697, %v694
        %v776 = vpack.c.b16 %v701, %v698
        %v777 = vpack.c.b16 %v702, %v699
        %v778 = vpack.c.b16 %v703, %v700
        %v779 = vpack.c.b16 %v707, %v704
        %v780 = vpack.c.b16 %v708, %v705
        %v781 = vpack.c.b16 %v709, %v706
        %v782 = vpack.c.b16 %v713, %v710
        %v783 = vpack.c.b16 %v714, %v711
        %v784 = vpack.c.b16 %v715, %v712
        %v785 = vpack.c.b16 %v719, %v716
        %v786 = vpack.c.b16 %v720, %v717
        %v787 = vpack.c.b16 %v721, %v718
        %v788 = vpack.c.b16 %v725, %v722
        %v789 = vpack.c.b16 %v726, %v723
        %v790 = vpack.c.b16 %v727, %v724
        %v791 = vpack.c.b16 %v731, %v728
        %v792 = vpack.c.b16 %v732, %v729
        %v793 = vpack.c.b16 %v733, %v730
        %v794 = vpack.c.b16 %v737, %v734
        %v795 = vpack.c.b16 %v738, %v735
        %v796 = vpack.c.b16 %v739, %v736
        %v797 = vpack.c.b16 %v743, %v740
        %v798 = vpack.c.b16 %v744, %v741
        %v799 = vpack.c.b16 %v745, %v742
        %v800 = vpack.c.b16 %v749, %v746
        %v801 = vpack.c.b16 %v750, %v747
        %v802 = vpack.c.b16 %v751, %v748
        %v803 = vpack.c.b16 %v755, %v752
        %v804 = vpack.c.b16 %v756, %v753
        %v805 = vpack.c.b16 %v757, %v754
        %v874 = vunpack.c.l.b16 %v370
        %v875 = vunpack.c.h.b16 %v370
        %v876 = vunpack.c.l.b16 %v371
        %v877 = vunpack.c.h.b16 %v371
        %v878 = vunpack.c.l.b16 %v372
        %v879 = vunpack.c.h.b16 %v372
        %v880 = vunpack.c.l.b16 %v373
        %v881 = vunpack.c.h.b16 %v373
        %v882 = vunpack.c.l.b16 %v374
        %v883 = vunpack.c.h.b16 %v374
        %v884 = vunpack.c.l.b16 %v375
        %v885 = vunpack.c.h.b16 %v375
        %v886 = vunpack.c.l.b16 %v376
        %v887 = vunpack.c.h.b16 %v376
        %v888 = vunpack.c.l.b16 %v377
        %v889 = vunpack.c.h.b16 %v377
        %v890 = vunpack.c.l.b16 %v378
        %v891 = vunpack.c.h.b16 %v378
        %v892 = vunpack.c.l.b16 %v379
        %v893 = vunpack.c.h.b16 %v379
        %v894 = vunpack.c.l.b16 %v380
        %v895 = vunpack.c.h.b16 %v380
        %v896 = vunpack.c.l.b16 %v381
        %v897 = vunpack.c.h.b16 %v381
        %v898 = vunpack.c.l.b16 %v382
        %v899 = vunpack.c.h.b16 %v382
        %v900 = vunpack.c.l.b16 %v383
        %v901 = vunpack.c.h.b16 %v383
        %v902 = vunpack.c.l.b16 %v384
        %v903 = vunpack.c.h.b16 %v384
        %v904 = vunpack.c.l.b16 %v385
        %v905 = vunpack.c.h.b16 %v385
        %v906 = vunpack.c.l.b16 %v386
        %v907 = vunpack.c.h.b16 %v386
        %v908 = vunpack.c.l.b16 %v387
        %v909 = vunpack.c.h.b16 %v387
        %v910 = vunpack.c.l.b16 %v388
        %v911 = vunpack.c.h.b16 %v388
        %v912 = vunpack.c.l.b16 %v389
        %v913 = vunpack.c.h.b16 %v389
        %v914 = vunpack.c.l.b16 %v390
        %v915 = vunpack.c.h.b16 %v390
        %v916 = vunpack.c.l.b16 %v391
        %v917 = vunpack.c.h.b16 %v391
        %v918 = vunpack.c.l.b16 %v392
        %v919 = vunpack.c.h.b16 %v392
        %v920 = vunpack.c.l.b16 %v393
        %v921 = vunpack.c.h.b16 %v393
        %v922 = vunpack.c.l.b16 %v394
        %v923 = vunpack.c.h.b16 %v394
        %v924 = vunpack.c.l.b16 %v395
        %v925 = vunpack.c.h.b16 %v395
        %v926 = vunpack.c.l.b16 %v396
        %v927 = vunpack.c.h.b16 %v396
        %v928 = vunpack.c.l.b16 %v397
        %v929 = vunpack.c.h.b16 %v397
        %v930 = vunpack.c.l.b16 %v398
        %v931 = vunpack.c.h.b16 %v398
        %v932 = vunpack.c.l.b16 %v399
        %v933 = vunpack.c.h.b16 %v399
        %v934 = vunpack.c.l.b16 %v400
        %v935 = vunpack.c.h.b16 %v400
        %v936 = vunpack.c.l.b16 %v401
        %v937 = vunpack.c.h.b16 %v401
        %v938 = vunpack.c.l.b16 %v402
        %v939 = vunpack.c.h.b16 %v402
        %v940 = vunpack.c.l.b16 %v403
        %v941 = vunpack.c.h.b16 %v403
        %v942 = vunpack.c.l.b16 %v404
        %v943 = vunpack.c.h.b16 %v404
        %v944 = vunpack.c.l.b16 %v405
        %v945 = vunpack.c.h.b16 %v405
        %v946 = vpack.c.b16 %v876, %v874
        %v947 = vpack.c.b16 %v877, %v875
        %v948 = vpack.c.b16 %v880, %v878
        %v949 = vpack.c.b16 %v881, %v879
        %v950 = vpack.c.b16 %v884, %v882
        %v951 = vpack.c.b16 %v885, %v883
        %v952 = vpack.c.b16 %v888, %v886
        %v953 = vpack.c.b16 %v889, %v887
        %v954 = vpack.c.b16 %v892, %v890
        %v955 = vpack.c.b16 %v893, %v891
        %v956 = vpack.c.b16 %v896, %v894
        %v957 = vpack.c.b16 %v897, %v895
        %v958 = vpack.c.b16 %v900, %v898
        %v959 = vpack.c.b16 %v901, %v899
        %v960 = vpack.c.b16 %v904, %v902
        %v961 = vpack.c.b16 %v905, %v903
        %v962 = vpack.c.b16 %v908, %v906
        %v963 = vpack.c.b16 %v909, %v907
        %v964 = vpack.c.b16 %v912, %v910
        %v965 = vpack.c.b16 %v913, %v911
        %v966 = vpack.c.b16 %v916, %v914
        %v967 = vpack.c.b16 %v917, %v915
        %v968 = vpack.c.b16 %v920, %v918
        %v969 = vpack.c.b16 %v921, %v919
        %v970 = vpack.c.b16 %v924, %v922
        %v971 = vpack.c.b16 %v925, %v923
        %v972 = vpack.c.b16 %v928, %v926
        %v973 = vpack.c.b16 %v929, %v927
        %v974 = vpack.c.b16 %v932, %v930
        %v975 = vpack.c.b16 %v933, %v931
        %v976 = vpack.c.b16 %v936, %v934
        %v977 = vpack.c.b16 %v937, %v935
        %v978 = vpack.c.b16 %v940, %v938
        %v979 = vpack.c.b16 %v941, %v939
        %v980 = vpack.c.b16 %v944, %v942
        %v981 = vpack.c.b16 %v945, %v943
        %vm1018 = vcmask 261120
        %v1020 = vsel %vm1018, %v760, 0
        %v1023 = vsel %vm1018, %v763, 0
        %v1026 = vsel %vm1018, %v766, 0
        %v1029 = vsel %vm1018, %v769, 0
        %v1032 = vsel %vm1018, %v772, 0
        %v1035 = vsel %vm1018, %v775, 0
        %v1038 = vsel %vm1018, %v778, 0
        %v1041 = vsel %vm1018, %v781, 0
        %v1044 = vsel %vm1018, %v784, 0
        %v1047 = vsel %vm1018, %v787, 0
        %v1050 = vsel %vm1018, %v790, 0
        %v1053 = vsel %vm1018, %v793, 0
        %v1056 = vsel %vm1018, %v796, 0
        %v1059 = vsel %vm1018, %v799, 0
        %v1062 = vsel %vm1018, %v802, 0
        %v1065 = vsel %vm1018, %v805, 0
        %1067 = vmatpush.bf16.msra.mxu0 %v960
        %1068 = vmatpush.bf16.msra.mxu0 %v958
        %1069 = vmatpush.bf16.msra.mxu0 %v956
        %1070 = vmatpush.bf16.msra.mxu0 %v954
        %1071 = vmatpush.bf16.msra.mxu0 %v952
        %1072 = vmatpush.bf16.msra.mxu0 %v950
        %1073 = vmatpush.bf16.msra.mxu0 %v948
        %1074 = vmatpush.bf16.msra.mxu0 %v946
        %1075 = vmatmul.bf16.gmra.mxu0 %v758
        %v1076 = vpop.f32.mrf.mxu0
        %v1077 = vadd.f32 %v441, %v1076
        %v1078 = vpop.f32.mrf.mxu0
        %v1079 = vadd.f32 %v446, %v1078
        %1080 = vmatmul.bf16.gmra.mxu0 %v761
        %v1081 = vpop.f32.mrf.mxu0
        %v1082 = vadd.f32 %v451, %v1081
        %v1083 = vpop.f32.mrf.mxu0
        %v1084 = vadd.f32 %v456, %v1083
        %1085 = vmatmul.bf16.gmra.mxu0 %v764
        %v1086 = vpop.f32.mrf.mxu0
        %v1087 = vadd.f32 %v461, %v1086
        %v1088 = vpop.f32.mrf.mxu0
        %v1089 = vadd.f32 %v466, %v1088
        %1090 = vmatmul.bf16.gmra.mxu0 %v767
        %v1091 = vpop.f32.mrf.mxu0
        %v1092 = vadd.f32 %v471, %v1091
        %v1093 = vpop.f32.mrf.mxu0
        %v1094 = vadd.f32 %v476, %v1093
        %1095 = vmatmul.bf16.gmra.mxu0 %v770
        %v1096 = vpop.f32.mrf.mxu0
        %v1097 = vadd.f32 %v481, %v1096
        %v1098 = vpop.f32.mrf.mxu0
        %v1099 = vadd.f32 %v486, %v1098
        %1100 = vmatmul.bf16.gmra.mxu0 %v773
        %v1101 = vpop.f32.mrf.mxu0
        %v1102 = vadd.f32 %v491, %v1101
        %v1103 = vpop.f32.mrf.mxu0
        %v1104 = vadd.f32 %v496, %v1103
        %1105 = vmatmul.bf16.gmra.mxu0 %v776
        %v1106 = vpop.f32.mrf.mxu0
        %v1107 = vadd.f32 %v501, %v1106
        %v1108 = vpop.f32.mrf.mxu0
        %v1109 = vadd.f32 %v506, %v1108
        %1110 = vmatmul.bf16.gmra.mxu0 %v779
        %v1111 = vpop.f32.mrf.mxu0
        %v1112 = vadd.f32 %v511, %v1111
        %v1113 = vpop.f32.mrf.mxu0
        %v1114 = vadd.f32 %v516, %v1113
        %1115 = vmatmul.bf16.gmra.mxu0 %v782
        %v1116 = vpop.f32.mrf.mxu0
        %v1117 = vadd.f32 %v521, %v1116
        %v1118 = vpop.f32.mrf.mxu0
        %v1119 = vadd.f32 %v526, %v1118
        %1120 = vmatmul.bf16.gmra.mxu0 %v785
        %v1121 = vpop.f32.mrf.mxu0
        %v1122 = vadd.f32 %v531, %v1121
        %v1123 = vpop.f32.mrf.mxu0
        %v1124 = vadd.f32 %v536, %v1123
        %1125 = vmatmul.bf16.gmra.mxu0 %v788
        %v1126 = vpop.f32.mrf.mxu0
        %v1127 = vadd.f32 %v541, %v1126
        %v1128 = vpop.f32.mrf.mxu0
        %v1129 = vadd.f32 %v546, %v1128
        %1130 = vmatmul.bf16.gmra.mxu0 %v791
        %v1131 = vpop.f32.mrf.mxu0
        %v1132 = vadd.f32 %v551, %v1131
        %v1133 = vpop.f32.mrf.mxu0
        %v1134 = vadd.f32 %v556, %v1133
        %1135 = vmatmul.bf16.gmra.mxu0 %v794
        %v1136 = vpop.f32.mrf.mxu0
        %v1137 = vadd.f32 %v561, %v1136
        %v1138 = vpop.f32.mrf.mxu0
        %v1139 = vadd.f32 %v566, %v1138
        %1140 = vmatmul.bf16.gmra.mxu0 %v797
        %v1141 = vpop.f32.mrf.mxu0
        %v1142 = vadd.f32 %v571, %v1141
        %v1143 = vpop.f32.mrf.mxu0
        %v1144 = vadd.f32 %v576, %v1143
        %1145 = vmatmul.bf16.gmra.mxu0 %v800
        %v1146 = vpop.f32.mrf.mxu0
        %v1147 = vadd.f32 %v581, %v1146
        %v1148 = vpop.f32.mrf.mxu0
        %v1149 = vadd.f32 %v586, %v1148
        %1150 = vmatmul.bf16.gmra.mxu0 %v803
        %v1151 = vpop.f32.mrf.mxu0
        %v1152 = vadd.f32 %v591, %v1151
        %v1153 = vpop.f32.mrf.mxu0
        %v1154 = vadd.f32 %v596, %v1153
        %1155 = vdwg.mxu0
        %1156 = vmatpush.bf16.msra.mxu0 %v976
        %1157 = vmatpush.bf16.msra.mxu0 %v974
        %1158 = vmatpush.bf16.msra.mxu0 %v972
        %1159 = vmatpush.bf16.msra.mxu0 %v970
        %1160 = vmatpush.bf16.msra.mxu0 %v968
        %1161 = vmatpush.bf16.msra.mxu0 %v966
        %1162 = vmatpush.bf16.msra.mxu0 %v964
        %1163 = vmatpush.bf16.msra.mxu0 %v962
        %1164 = vmatmul.bf16.gmra.mxu0 %v759
        %v1165 = vpop.f32.mrf.mxu0
        %v1166 = vadd.f32 %v1077, %v1165
        %v1167 = vpop.f32.mrf.mxu0
        %v1168 = vadd.f32 %v1079, %v1167
        %1169 = vmatmul.bf16.gmra.mxu0 %v762
        %v1170 = vpop.f32.mrf.mxu0
        %v1171 = vadd.f32 %v1082, %v1170
        %v1172 = vpop.f32.mrf.mxu0
        %v1173 = vadd.f32 %v1084, %v1172
        %1174 = vmatmul.bf16.gmra.mxu0 %v765
        %v1175 = vpop.f32.mrf.mxu0
        %v1176 = vadd.f32 %v1087, %v1175
        %v1177 = vpop.f32.mrf.mxu0
        %v1178 = vadd.f32 %v1089, %v1177
        %1179 = vmatmul.bf16.gmra.mxu0 %v768
        %v1180 = vpop.f32.mrf.mxu0
        %v1181 = vadd.f32 %v1092, %v1180
        %v1182 = vpop.f32.mrf.mxu0
        %v1183 = vadd.f32 %v1094, %v1182
        %1184 = vmatmul.bf16.gmra.mxu0 %v771
        %v1185 = vpop.f32.mrf.mxu0
        %v1186 = vadd.f32 %v1097, %v1185
        %v1187 = vpop.f32.mrf.mxu0
        %v1188 = vadd.f32 %v1099, %v1187
        %1189 = vmatmul.bf16.gmra.mxu0 %v774
        %v1190 = vpop.f32.mrf.mxu0
        %v1191 = vadd.f32 %v1102, %v1190
        %v1192 = vpop.f32.mrf.mxu0
        %v1193 = vadd.f32 %v1104, %v1192
        %1194 = vmatmul.bf16.gmra.mxu0 %v777
        %v1195 = vpop.f32.mrf.mxu0
        %v1196 = vadd.f32 %v1107, %v1195
        %v1197 = vpop.f32.mrf.mxu0
        %v1198 = vadd.f32 %v1109, %v1197
        %1199 = vmatmul.bf16.gmra.mxu0 %v780
        %v1200 = vpop.f32.mrf.mxu0
        %v1201 = vadd.f32 %v1112, %v1200
        %v1202 = vpop.f32.mrf.mxu0
        %v1203 = vadd.f32 %v1114, %v1202
        %1204 = vmatmul.bf16.gmra.mxu0 %v783
        %v1205 = vpop.f32.mrf.mxu0
        %v1206 = vadd.f32 %v1117, %v1205
        %v1207 = vpop.f32.mrf.mxu0
        %v1208 = vadd.f32 %v1119, %v1207
        %1209 = vmatmul.bf16.gmra.mxu0 %v786
        %v1210 = vpop.f32.mrf.mxu0
        %v1211 = vadd.f32 %v1122, %v1210
        %v1212 = vpop.f32.mrf.mxu0
        %v1213 = vadd.f32 %v1124, %v1212
        %1214 = vmatmul.bf16.gmra.mxu0 %v789
        %v1215 = vpop.f32.mrf.mxu0
        %v1216 = vadd.f32 %v1127, %v1215
        %v1217 = vpop.f32.mrf.mxu0
        %v1218 = vadd.f32 %v1129, %v1217
        %1219 = vmatmul.bf16.gmra.mxu0 %v792
        %v1220 = vpop.f32.mrf.mxu0
        %v1221 = vadd.f32 %v1132, %v1220
        %v1222 = vpop.f32.mrf.mxu0
        %v1223 = vadd.f32 %v1134, %v1222
        %1224 = vmatmul.bf16.gmra.mxu0 %v795
        %v1225 = vpop.f32.mrf.mxu0
        %v1226 = vadd.f32 %v1137, %v1225
        %v1227 = vpop.f32.mrf.mxu0
        %v1228 = vadd.f32 %v1139, %v1227
        %1229 = vmatmul.bf16.gmra.mxu0 %v798
        %v1230 = vpop.f32.mrf.mxu0
        %v1231 = vadd.f32 %v1142, %v1230
        %v1232 = vpop.f32.mrf.mxu0
        %v1233 = vadd.f32 %v1144, %v1232
        %1234 = vmatmul.bf16.gmra.mxu0 %v801
        %v1235 = vpop.f32.mrf.mxu0
        %v1236 = vadd.f32 %v1147, %v1235
        %v1237 = vpop.f32.mrf.mxu0
        %v1238 = vadd.f32 %v1149, %v1237
        %1239 = vmatmul.bf16.gmra.mxu0 %v804
        %v1240 = vpop.f32.mrf.mxu0
        %v1241 = vadd.f32 %v1152, %v1240
        %v1242 = vpop.f32.mrf.mxu0
        %v1243 = vadd.f32 %v1154, %v1242
        %1244 = vdwg.mxu0
        %1245 = vmatpush.bf16.msra.mxu0 0
        %1246 = vmatpush.bf16.msra.mxu0 0
        %1247 = vmatpush.bf16.msra.mxu0 0
        %1248 = vmatpush.bf16.msra.mxu0 0
        %1249 = vmatpush.bf16.msra.mxu0 0
        %1250 = vmatpush.bf16.msra.mxu0 0
        %1251 = vmatpush.bf16.msra.mxu0 %v980
        %1252 = vmatpush.bf16.msra.mxu0 %v978
        %1253 = vmatmul.bf16.gmra.mxu0 %v1020
        %v1254 = vpop.f32.mrf.mxu0
        %v1255 = vadd.f32 %v1166, %v1254
        %v1256 = vpop.f32.mrf.mxu0
        %v1257 = vadd.f32 %v1168, %v1256
        %1258 = vmatmul.bf16.gmra.mxu0 %v1023
        %v1259 = vpop.f32.mrf.mxu0
        %v1260 = vadd.f32 %v1171, %v1259
        %v1261 = vpop.f32.mrf.mxu0
        %v1262 = vadd.f32 %v1173, %v1261
        %1263 = vmatmul.bf16.gmra.mxu0 %v1026
        %v1264 = vpop.f32.mrf.mxu0
        %v1265 = vadd.f32 %v1176, %v1264
        %v1266 = vpop.f32.mrf.mxu0
        %v1267 = vadd.f32 %v1178, %v1266
        %1268 = vmatmul.bf16.gmra.mxu0 %v1029
        %v1269 = vpop.f32.mrf.mxu0
        %v1270 = vadd.f32 %v1181, %v1269
        %v1271 = vpop.f32.mrf.mxu0
        %v1272 = vadd.f32 %v1183, %v1271
        %1273 = vmatmul.bf16.gmra.mxu0 %v1032
        %v1274 = vpop.f32.mrf.mxu0
        %v1275 = vadd.f32 %v1186, %v1274
        %v1276 = vpop.f32.mrf.mxu0
        %v1277 = vadd.f32 %v1188, %v1276
        %1278 = vmatmul.bf16.gmra.mxu0 %v1035
        %v1279 = vpop.f32.mrf.mxu0
        %v1280 = vadd.f32 %v1191, %v1279
        %v1281 = vpop.f32.mrf.mxu0
        %v1282 = vadd.f32 %v1193, %v1281
        %1283 = vmatmul.bf16.gmra.mxu0 %v1038
        %v1284 = vpop.f32.mrf.mxu0
        %v1285 = vadd.f32 %v1196, %v1284
        %v1286 = vpop.f32.mrf.mxu0
        %v1287 = vadd.f32 %v1198, %v1286
        %1288 = vmatmul.bf16.gmra.mxu0 %v1041
        %v1289 = vpop.f32.mrf.mxu0
        %v1290 = vadd.f32 %v1201, %v1289
        %v1291 = vpop.f32.mrf.mxu0
        %v1292 = vadd.f32 %v1203, %v1291
        %1293 = vmatmul.bf16.gmra.mxu0 %v1044
        %v1294 = vpop.f32.mrf.mxu0
        %v1295 = vadd.f32 %v1206, %v1294
        %v1296 = vpop.f32.mrf.mxu0
        %v1297 = vadd.f32 %v1208, %v1296
        %1298 = vmatmul.bf16.gmra.mxu0 %v1047
        %v1299 = vpop.f32.mrf.mxu0
        %v1300 = vadd.f32 %v1211, %v1299
        %v1301 = vpop.f32.mrf.mxu0
        %v1302 = vadd.f32 %v1213, %v1301
        %1303 = vmatmul.bf16.gmra.mxu0 %v1050
        %v1304 = vpop.f32.mrf.mxu0
        %v1305 = vadd.f32 %v1216, %v1304
        %v1306 = vpop.f32.mrf.mxu0
        %v1307 = vadd.f32 %v1218, %v1306
        %1308 = vmatmul.bf16.gmra.mxu0 %v1053
        %v1309 = vpop.f32.mrf.mxu0
        %v1310 = vadd.f32 %v1221, %v1309
        %v1311 = vpop.f32.mrf.mxu0
        %v1312 = vadd.f32 %v1223, %v1311
        %1313 = vmatmul.bf16.gmra.mxu0 %v1056
        %v1314 = vpop.f32.mrf.mxu0
        %v1315 = vadd.f32 %v1226, %v1314
        %v1316 = vpop.f32.mrf.mxu0
        %v1317 = vadd.f32 %v1228, %v1316
        %1318 = vmatmul.bf16.gmra.mxu0 %v1059
        %v1319 = vpop.f32.mrf.mxu0
        %v1320 = vadd.f32 %v1231, %v1319
        %v1321 = vpop.f32.mrf.mxu0
        %v1322 = vadd.f32 %v1233, %v1321
        %1323 = vmatmul.bf16.gmra.mxu0 %v1062
        %v1324 = vpop.f32.mrf.mxu0
        %v1325 = vadd.f32 %v1236, %v1324
        %v1326 = vpop.f32.mrf.mxu0
        %v1327 = vadd.f32 %v1238, %v1326
        %1328 = vmatmul.bf16.gmra.mxu0 %v1065
        %v1329 = vpop.f32.mrf.mxu0
        %v1330 = vadd.f32 %v1241, %v1329
        %v1331 = vpop.f32.mrf.mxu0
        %v1332 = vadd.f32 %v1243, %v1331
        %1333 = vdwg.mxu0
        %1334 = vmatpush.bf16.msra.mxu0 %v961
        %1335 = vmatpush.bf16.msra.mxu0 %v959
        %1336 = vmatpush.bf16.msra.mxu0 %v957
        %1337 = vmatpush.bf16.msra.mxu0 %v955
        %1338 = vmatpush.bf16.msra.mxu0 %v953
        %1339 = vmatpush.bf16.msra.mxu0 %v951
        %1340 = vmatpush.bf16.msra.mxu0 %v949
        %1341 = vmatpush.bf16.msra.mxu0 %v947
        %1342 = vmatmul.bf16.gmra.mxu0 %v758
        %v1343 = vpop.f32.mrf.mxu0
        %v1344 = vadd.f32 %v441, %v1343
        %v1345 = vpop.f32.mrf.mxu0
        %v1346 = vadd.f32 %v446, %v1345
        %1347 = vmatmul.bf16.gmra.mxu0 %v761
        %v1348 = vpop.f32.mrf.mxu0
        %v1349 = vadd.f32 %v451, %v1348
        %v1350 = vpop.f32.mrf.mxu0
        %v1351 = vadd.f32 %v456, %v1350
        %1352 = vmatmul.bf16.gmra.mxu0 %v764
        %v1353 = vpop.f32.mrf.mxu0
        %v1354 = vadd.f32 %v461, %v1353
        %v1355 = vpop.f32.mrf.mxu0
        %v1356 = vadd.f32 %v466, %v1355
        %1357 = vmatmul.bf16.gmra.mxu0 %v767
        %v1358 = vpop.f32.mrf.mxu0
        %v1359 = vadd.f32 %v471, %v1358
        %v1360 = vpop.f32.mrf.mxu0
        %v1361 = vadd.f32 %v476, %v1360
        %1362 = vmatmul.bf16.gmra.mxu0 %v770
        %v1363 = vpop.f32.mrf.mxu0
        %v1364 = vadd.f32 %v481, %v1363
        %v1365 = vpop.f32.mrf.mxu0
        %v1366 = vadd.f32 %v486, %v1365
        %1367 = vmatmul.bf16.gmra.mxu0 %v773
        %v1368 = vpop.f32.mrf.mxu0
        %v1369 = vadd.f32 %v491, %v1368
        %v1370 = vpop.f32.mrf.mxu0
        %v1371 = vadd.f32 %v496, %v1370
        %1372 = vmatmul.bf16.gmra.mxu0 %v776
        %v1373 = vpop.f32.mrf.mxu0
        %v1374 = vadd.f32 %v501, %v1373
        %v1375 = vpop.f32.mrf.mxu0
        %v1376 = vadd.f32 %v506, %v1375
        %1377 = vmatmul.bf16.gmra.mxu0 %v779
        %v1378 = vpop.f32.mrf.mxu0
        %v1379 = vadd.f32 %v511, %v1378
        %v1380 = vpop.f32.mrf.mxu0
        %v1381 = vadd.f32 %v516, %v1380
        %1382 = vmatmul.bf16.gmra.mxu0 %v782
        %v1383 = vpop.f32.mrf.mxu0
        %v1384 = vadd.f32 %v521, %v1383
        %v1385 = vpop.f32.mrf.mxu0
        %v1386 = vadd.f32 %v526, %v1385
        %1387 = vmatmul.bf16.gmra.mxu0 %v785
        %v1388 = vpop.f32.mrf.mxu0
        %v1389 = vadd.f32 %v531, %v1388
        %v1390 = vpop.f32.mrf.mxu0
        %v1391 = vadd.f32 %v536, %v1390
        %1392 = vmatmul.bf16.gmra.mxu0 %v788
        %v1393 = vpop.f32.mrf.mxu0
        %v1394 = vadd.f32 %v541, %v1393
        %v1395 = vpop.f32.mrf.mxu0
        %v1396 = vadd.f32 %v546, %v1395
        %1397 = vmatmul.bf16.gmra.mxu0 %v791
        %v1398 = vpop.f32.mrf.mxu0
        %v1399 = vadd.f32 %v551, %v1398
        %v1400 = vpop.f32.mrf.mxu0
        %v1401 = vadd.f32 %v556, %v1400
        %1402 = vmatmul.bf16.gmra.mxu0 %v794
        %v1403 = vpop.f32.mrf.mxu0
        %v1404 = vadd.f32 %v561, %v1403
        %v1405 = vpop.f32.mrf.mxu0
        %v1406 = vadd.f32 %v566, %v1405
        %1407 = vmatmul.bf16.gmra.mxu0 %v797
        %v1408 = vpop.f32.mrf.mxu0
        %v1409 = vadd.f32 %v571, %v1408
        %v1410 = vpop.f32.mrf.mxu0
        %v1411 = vadd.f32 %v576, %v1410
        %1412 = vmatmul.bf16.gmra.mxu0 %v800
        %v1413 = vpop.f32.mrf.mxu0
        %v1414 = vadd.f32 %v581, %v1413
        %v1415 = vpop.f32.mrf.mxu0
        %v1416 = vadd.f32 %v586, %v1415
        %1417 = vmatmul.bf16.gmra.mxu0 %v803
        %v1418 = vpop.f32.mrf.mxu0
        %v1419 = vadd.f32 %v591, %v1418
        %v1420 = vpop.f32.mrf.mxu0
        %v1421 = vadd.f32 %v596, %v1420
        %1422 = vdwg.mxu0
        %1423 = vmatpush.bf16.msra.mxu0 %v977
        %1424 = vmatpush.bf16.msra.mxu0 %v975
        %1425 = vmatpush.bf16.msra.mxu0 %v973
        %1426 = vmatpush.bf16.msra.mxu0 %v971
        %1427 = vmatpush.bf16.msra.mxu0 %v969
        %1428 = vmatpush.bf16.msra.mxu0 %v967
        %1429 = vmatpush.bf16.msra.mxu0 %v965
        %1430 = vmatpush.bf16.msra.mxu0 %v963
        %1431 = vmatmul.bf16.gmra.mxu0 %v759
        %v1432 = vpop.f32.mrf.mxu0
        %v1433 = vadd.f32 %v1344, %v1432
        %v1434 = vpop.f32.mrf.mxu0
        %v1435 = vadd.f32 %v1346, %v1434
        %1436 = vmatmul.bf16.gmra.mxu0 %v762
        %v1437 = vpop.f32.mrf.mxu0
        %v1438 = vadd.f32 %v1349, %v1437
        %v1439 = vpop.f32.mrf.mxu0
        %v1440 = vadd.f32 %v1351, %v1439
        %1441 = vmatmul.bf16.gmra.mxu0 %v765
        %v1442 = vpop.f32.mrf.mxu0
        %v1443 = vadd.f32 %v1354, %v1442
        %v1444 = vpop.f32.mrf.mxu0
        %v1445 = vadd.f32 %v1356, %v1444
        %1446 = vmatmul.bf16.gmra.mxu0 %v768
        %v1447 = vpop.f32.mrf.mxu0
        %v1448 = vadd.f32 %v1359, %v1447
        %v1449 = vpop.f32.mrf.mxu0
        %v1450 = vadd.f32 %v1361, %v1449
        %1451 = vmatmul.bf16.gmra.mxu0 %v771
        %v1452 = vpop.f32.mrf.mxu0
        %v1453 = vadd.f32 %v1364, %v1452
        %v1454 = vpop.f32.mrf.mxu0
        %v1455 = vadd.f32 %v1366, %v1454
        %1456 = vmatmul.bf16.gmra.mxu0 %v774
        %v1457 = vpop.f32.mrf.mxu0
        %v1458 = vadd.f32 %v1369, %v1457
        %v1459 = vpop.f32.mrf.mxu0
        %v1460 = vadd.f32 %v1371, %v1459
        %1461 = vmatmul.bf16.gmra.mxu0 %v777
        %v1462 = vpop.f32.mrf.mxu0
        %v1463 = vadd.f32 %v1374, %v1462
        %v1464 = vpop.f32.mrf.mxu0
        %v1465 = vadd.f32 %v1376, %v1464
        %1466 = vmatmul.bf16.gmra.mxu0 %v780
        %v1467 = vpop.f32.mrf.mxu0
        %v1468 = vadd.f32 %v1379, %v1467
        %v1469 = vpop.f32.mrf.mxu0
        %v1470 = vadd.f32 %v1381, %v1469
        %1471 = vmatmul.bf16.gmra.mxu0 %v783
        %v1472 = vpop.f32.mrf.mxu0
        %v1473 = vadd.f32 %v1384, %v1472
        %v1474 = vpop.f32.mrf.mxu0
        %v1475 = vadd.f32 %v1386, %v1474
        %1476 = vmatmul.bf16.gmra.mxu0 %v786
        %v1477 = vpop.f32.mrf.mxu0
        %v1478 = vadd.f32 %v1389, %v1477
        %v1479 = vpop.f32.mrf.mxu0
        %v1480 = vadd.f32 %v1391, %v1479
        %1481 = vmatmul.bf16.gmra.mxu0 %v789
        %v1482 = vpop.f32.mrf.mxu0
        %v1483 = vadd.f32 %v1394, %v1482
        %v1484 = vpop.f32.mrf.mxu0
        %v1485 = vadd.f32 %v1396, %v1484
        %1486 = vmatmul.bf16.gmra.mxu0 %v792
        %v1487 = vpop.f32.mrf.mxu0
        %v1488 = vadd.f32 %v1399, %v1487
        %v1489 = vpop.f32.mrf.mxu0
        %v1490 = vadd.f32 %v1401, %v1489
        %1491 = vmatmul.bf16.gmra.mxu0 %v795
        %v1492 = vpop.f32.mrf.mxu0
        %v1493 = vadd.f32 %v1404, %v1492
        %v1494 = vpop.f32.mrf.mxu0
        %v1495 = vadd.f32 %v1406, %v1494
        %1496 = vmatmul.bf16.gmra.mxu0 %v798
        %v1497 = vpop.f32.mrf.mxu0
        %v1498 = vadd.f32 %v1409, %v1497
        %v1499 = vpop.f32.mrf.mxu0
        %v1500 = vadd.f32 %v1411, %v1499
        %1501 = vmatmul.bf16.gmra.mxu0 %v801
        %v1502 = vpop.f32.mrf.mxu0
        %v1503 = vadd.f32 %v1414, %v1502
        %v1504 = vpop.f32.mrf.mxu0
        %v1505 = vadd.f32 %v1416, %v1504
        %1506 = vmatmul.bf16.gmra.mxu0 %v804
        %v1507 = vpop.f32.mrf.mxu0
        %v1508 = vadd.f32 %v1419, %v1507
        %v1509 = vpop.f32.mrf.mxu0
        %v1510 = vadd.f32 %v1421, %v1509
        %1511 = vdwg.mxu0
        %1512 = vmatpush.bf16.msra.mxu0 0
        %1513 = vmatpush.bf16.msra.mxu0 0
        %1514 = vmatpush.bf16.msra.mxu0 0
        %1515 = vmatpush.bf16.msra.mxu0 0
        %1516 = vmatpush.bf16.msra.mxu0 0
        %1517 = vmatpush.bf16.msra.mxu0 0
        %1518 = vmatpush.bf16.msra.mxu0 %v981
        %1519 = vmatpush.bf16.msra.mxu0 %v979
        %1520 = vmatmul.bf16.gmra.mxu0 %v1020
        %v1521 = vpop.f32.mrf.mxu0
        %v1522 = vadd.f32 %v1433, %v1521
        %v1523 = vpop.f32.mrf.mxu0
        %v1524 = vadd.f32 %v1435, %v1523
        %1525 = vmatmul.bf16.gmra.mxu0 %v1023
        %v1526 = vpop.f32.mrf.mxu0
        %v1527 = vadd.f32 %v1438, %v1526
        %v1528 = vpop.f32.mrf.mxu0
        %v1529 = vadd.f32 %v1440, %v1528
        %1530 = vmatmul.bf16.gmra.mxu0 %v1026
        %v1531 = vpop.f32.mrf.mxu0
        %v1532 = vadd.f32 %v1443, %v1531
        %v1533 = vpop.f32.mrf.mxu0
        %v1534 = vadd.f32 %v1445, %v1533
        %1535 = vmatmul.bf16.gmra.mxu0 %v1029
        %v1536 = vpop.f32.mrf.mxu0
        %v1537 = vadd.f32 %v1448, %v1536
        %v1538 = vpop.f32.mrf.mxu0
        %v1539 = vadd.f32 %v1450, %v1538
        %1540 = vmatmul.bf16.gmra.mxu0 %v1032
        %v1541 = vpop.f32.mrf.mxu0
        %v1542 = vadd.f32 %v1453, %v1541
        %v1543 = vpop.f32.mrf.mxu0
        %v1544 = vadd.f32 %v1455, %v1543
        %1545 = vmatmul.bf16.gmra.mxu0 %v1035
        %v1546 = vpop.f32.mrf.mxu0
        %v1547 = vadd.f32 %v1458, %v1546
        %v1548 = vpop.f32.mrf.mxu0
        %v1549 = vadd.f32 %v1460, %v1548
        %1550 = vmatmul.bf16.gmra.mxu0 %v1038
        %v1551 = vpop.f32.mrf.mxu0
        %v1552 = vadd.f32 %v1463, %v1551
        %v1553 = vpop.f32.mrf.mxu0
        %v1554 = vadd.f32 %v1465, %v1553
        %1555 = vmatmul.bf16.gmra.mxu0 %v1041
        %v1556 = vpop.f32.mrf.mxu0
        %v1557 = vadd.f32 %v1468, %v1556
        %v1558 = vpop.f32.mrf.mxu0
        %v1559 = vadd.f32 %v1470, %v1558
        %1560 = vmatmul.bf16.gmra.mxu0 %v1044
        %v1561 = vpop.f32.mrf.mxu0
        %v1562 = vadd.f32 %v1473, %v1561
        %v1563 = vpop.f32.mrf.mxu0
        %v1564 = vadd.f32 %v1475, %v1563
        %1565 = vmatmul.bf16.gmra.mxu0 %v1047
        %v1566 = vpop.f32.mrf.mxu0
        %v1567 = vadd.f32 %v1478, %v1566
        %v1568 = vpop.f32.mrf.mxu0
        %v1569 = vadd.f32 %v1480, %v1568
        %1570 = vmatmul.bf16.gmra.mxu0 %v1050
        %v1571 = vpop.f32.mrf.mxu0
        %v1572 = vadd.f32 %v1483, %v1571
        %v1573 = vpop.f32.mrf.mxu0
        %v1574 = vadd.f32 %v1485, %v1573
        %1575 = vmatmul.bf16.gmra.mxu0 %v1053
        %v1576 = vpop.f32.mrf.mxu0
        %v1577 = vadd.f32 %v1488, %v1576
        %v1578 = vpop.f32.mrf.mxu0
        %v1579 = vadd.f32 %v1490, %v1578
        %1580 = vmatmul.bf16.gmra.mxu0 %v1056
        %v1581 = vpop.f32.mrf.mxu0
        %v1582 = vadd.f32 %v1493, %v1581
        %v1583 = vpop.f32.mrf.mxu0
        %v1584 = vadd.f32 %v1495, %v1583
        %1585 = vmatmul.bf16.gmra.mxu0 %v1059
        %v1586 = vpop.f32.mrf.mxu0
        %v1587 = vadd.f32 %v1498, %v1586
        %v1588 = vpop.f32.mrf.mxu0
        %v1589 = vadd.f32 %v1500, %v1588
        %1590 = vmatmul.bf16.gmra.mxu0 %v1062
        %v1591 = vpop.f32.mrf.mxu0
        %v1592 = vadd.f32 %v1503, %v1591
        %v1593 = vpop.f32.mrf.mxu0
        %v1594 = vadd.f32 %v1505, %v1593
        %1595 = vmatmul.bf16.gmra.mxu0 %v1065
        %v1596 = vpop.f32.mrf.mxu0
        %v1597 = vadd.f32 %v1508, %v1596
        %v1598 = vpop.f32.mrf.mxu0
        %v1599 = vadd.f32 %v1510, %v1598
        %1600 = vdwg.mxu0
        %v1601 = vmul.f32 %v1255, 0.01
        %v1602 = vmul.f32 %v1522, 0.01
        %v1603 = vmul.f32 %v1257, 0.01
        %v1604 = vmul.f32 %v1524, 0.01
        %v1605 = vmul.f32 %v1260, 0.01
        %v1606 = vmul.f32 %v1527, 0.01
        %v1607 = vmul.f32 %v1262, 0.01
        %v1608 = vmul.f32 %v1529, 0.01
        %v1609 = vmul.f32 %v1265, 0.01
        %v1610 = vmul.f32 %v1532, 0.01
        %v1611 = vmul.f32 %v1267, 0.01
        %v1612 = vmul.f32 %v1534, 0.01
        %v1613 = vmul.f32 %v1270, 0.01
        %v1614 = vmul.f32 %v1537, 0.01
        %v1615 = vmul.f32 %v1272, 0.01
        %v1616 = vmul.f32 %v1539, 0.01
        %v1617 = vmul.f32 %v1275, 0.01
        %v1618 = vmul.f32 %v1542, 0.01
        %v1619 = vmul.f32 %v1277, 0.01
        %v1620 = vmul.f32 %v1544, 0.01
        %v1621 = vmul.f32 %v1280, 0.01
        %v1622 = vmul.f32 %v1547, 0.01
        %v1623 = vmul.f32 %v1282, 0.01
        %v1624 = vmul.f32 %v1549, 0.01
        %v1625 = vmul.f32 %v1285, 0.01
        %v1626 = vmul.f32 %v1552, 0.01
        %v1627 = vmul.f32 %v1287, 0.01
        %v1628 = vmul.f32 %v1554, 0.01
        %v1629 = vmul.f32 %v1290, 0.01
        %v1630 = vmul.f32 %v1557, 0.01
        %v1631 = vmul.f32 %v1292, 0.01
        %v1632 = vmul.f32 %v1559, 0.01
        %v1633 = vmul.f32 %v1295, 0.01
        %v1634 = vmul.f32 %v1562, 0.01
        %v1635 = vmul.f32 %v1297, 0.01
        %v1636 = vmul.f32 %v1564, 0.01
        %v1637 = vmul.f32 %v1300, 0.01
        %v1638 = vmul.f32 %v1567, 0.01
        %v1639 = vmul.f32 %v1302, 0.01
        %v1640 = vmul.f32 %v1569, 0.01
        %v1641 = vmul.f32 %v1305, 0.01
        %v1642 = vmul.f32 %v1572, 0.01
        %v1643 = vmul.f32 %v1307, 0.01
        %v1644 = vmul.f32 %v1574, 0.01
        %v1645 = vmul.f32 %v1310, 0.01
        %v1646 = vmul.f32 %v1577, 0.01
        %v1647 = vmul.f32 %v1312, 0.01
        %v1648 = vmul.f32 %v1579, 0.01
        %v1649 = vmul.f32 %v1315, 0.01
        %v1650 = vmul.f32 %v1582, 0.01
        %v1651 = vmul.f32 %v1317, 0.01
        %v1652 = vmul.f32 %v1584, 0.01
        %v1653 = vmul.f32 %v1320, 0.01
        %v1654 = vmul.f32 %v1587, 0.01
        %v1655 = vmul.f32 %v1322, 0.01
        %v1656 = vmul.f32 %v1589, 0.01
        %v1657 = vmul.f32 %v1325, 0.01
        %v1658 = vmul.f32 %v1592, 0.01
        %v1659 = vmul.f32 %v1327, 0.01
        %v1660 = vmul.f32 %v1594, 0.01
        %v1661 = vmul.f32 %v1330, 0.01
        %v1662 = vmul.f32 %v1597, 0.01
        %v1663 = vmul.f32 %v1332, 0.01
        %v1664 = vmul.f32 %v1599, 0.01
        %v1665 = vmax.f32 %v1255, %v1601
        %v1666 = vmax.f32 %v1522, %v1602
        %v1667 = vmax.f32 %v1257, %v1603
        %v1668 = vmax.f32 %v1524, %v1604
        %v1669 = vmax.f32 %v1260, %v1605
        %v1670 = vmax.f32 %v1527, %v1606
        %v1671 = vmax.f32 %v1262, %v1607
        %v1672 = vmax.f32 %v1529, %v1608
        %v1673 = vmax.f32 %v1265, %v1609
        %v1674 = vmax.f32 %v1532, %v1610
        %v1675 = vmax.f32 %v1267, %v1611
        %v1676 = vmax.f32 %v1534, %v1612
        %v1677 = vmax.f32 %v1270, %v1613
        %v1678 = vmax.f32 %v1537, %v1614
        %v1679 = vmax.f32 %v1272, %v1615
        %v1680 = vmax.f32 %v1539, %v1616
        %v1681 = vmax.f32 %v1275, %v1617
        %v1682 = vmax.f32 %v1542, %v1618
        %v1683 = vmax.f32 %v1277, %v1619
        %v1684 = vmax.f32 %v1544, %v1620
        %v1685 = vmax.f32 %v1280, %v1621
        %v1686 = vmax.f32 %v1547, %v1622
        %v1687 = vmax.f32 %v1282, %v1623
        %v1688 = vmax.f32 %v1549, %v1624
        %v1689 = vmax.f32 %v1285, %v1625
        %v1690 = vmax.f32 %v1552, %v1626
        %v1691 = vmax.f32 %v1287, %v1627
        %v1692 = vmax.f32 %v1554, %v1628
        %v1693 = vmax.f32 %v1290, %v1629
        %v1694 = vmax.f32 %v1557, %v1630
        %v1695 = vmax.f32 %v1292, %v1631
        %v1696 = vmax.f32 %v1559, %v1632
        %v1697 = vmax.f32 %v1295, %v1633
        %v1698 = vmax.f32 %v1562, %v1634
        %v1699 = vmax.f32 %v1297, %v1635
        %v1700 = vmax.f32 %v1564, %v1636
        %v1701 = vmax.f32 %v1300, %v1637
        %v1702 = vmax.f32 %v1567, %v1638
        %v1703 = vmax.f32 %v1302, %v1639
        %v1704 = vmax.f32 %v1569, %v1640
        %v1705 = vmax.f32 %v1305, %v1641
        %v1706 = vmax.f32 %v1572, %v1642
        %v1707 = vmax.f32 %v1307, %v1643
        %v1708 = vmax.f32 %v1574, %v1644
        %v1709 = vmax.f32 %v1310, %v1645
        %v1710 = vmax.f32 %v1577, %v1646
        %v1711 = vmax.f32 %v1312, %v1647
        %v1712 = vmax.f32 %v1579, %v1648
        %v1713 = vmax.f32 %v1315, %v1649
        %v1714 = vmax.f32 %v1582, %v1650
        %v1715 = vmax.f32 %v1317, %v1651
        %v1716 = vmax.f32 %v1584, %v1652
        %v1717 = vmax.f32 %v1320, %v1653
        %v1718 = vmax.f32 %v1587, %v1654
        %v1719 = vmax.f32 %v1322, %v1655
        %v1720 = vmax.f32 %v1589, %v1656
        %v1721 = vmax.f32 %v1325, %v1657
        %v1722 = vmax.f32 %v1592, %v1658
        %v1723 = vmax.f32 %v1327, %v1659
        %v1724 = vmax.f32 %v1594, %v1660
        %v1725 = vmax.f32 %v1330, %v1661
        %v1726 = vmax.f32 %v1597, %v1662
        %v1727 = vmax.f32 %v1332, %v1663
        %v1728 = vmax.f32 %v1599, %v1664
        %v1729 = vld [vmem:[%s3] sm:$0xff]
        %v1730 = vld [vmem:[%s3 + $0x8] sm:$0xff]
        %v1731 = vld [vmem:[%s3 + $0x10] sm:$0xff]
        %v1732 = vld [vmem:[%s3 + $0x18] sm:$0xff]
        %v1733 = vld [vmem:[%s3 + $0x20] sm:$0xff]
        %v1734 = vld [vmem:[%s3 + $0x28] sm:$0xff]
        %v1735 = vld [vmem:[%s3 + $0x30] sm:$0xff]
        %v1736 = vld [vmem:[%s3 + $0x38] sm:$0xff]
        %v1737 = vld [vmem:[%s3 + $0x40] sm:$0xff]
        %v1738 = vld [vmem:[%s3 + $0x48] sm:$0xff]
        %v1739 = vld [vmem:[%s3 + $0x50] sm:$0xff]
        %v1740 = vld [vmem:[%s3 + $0x58] sm:$0xff]
        %v1741 = vld [vmem:[%s3 + $0x60] sm:$0xff]
        %v1742 = vld [vmem:[%s3 + $0x68] sm:$0xff]
        %v1743 = vld [vmem:[%s3 + $0x70] sm:$0xff]
        %v1744 = vld [vmem:[%s3 + $0x78] sm:$0xff]
        %v1745 = vpack.c.bf16 %v1667, %v1665
        %v1746 = vpack.c.bf16 %v1668, %v1666
        %v1747 = vpack.c.bf16 %v1671, %v1669
        %v1748 = vpack.c.bf16 %v1672, %v1670
        %v1749 = vpack.c.bf16 %v1675, %v1673
        %v1750 = vpack.c.bf16 %v1676, %v1674
        %v1751 = vpack.c.bf16 %v1679, %v1677
        %v1752 = vpack.c.bf16 %v1680, %v1678
        %v1753 = vpack.c.bf16 %v1683, %v1681
        %v1754 = vpack.c.bf16 %v1684, %v1682
        %v1755 = vpack.c.bf16 %v1687, %v1685
        %v1756 = vpack.c.bf16 %v1688, %v1686
        %v1757 = vpack.c.bf16 %v1691, %v1689
        %v1758 = vpack.c.bf16 %v1692, %v1690
        %v1759 = vpack.c.bf16 %v1695, %v1693
        %v1760 = vpack.c.bf16 %v1696, %v1694
        %v1761 = vpack.c.bf16 %v1699, %v1697
        %v1762 = vpack.c.bf16 %v1700, %v1698
        %v1763 = vpack.c.bf16 %v1703, %v1701
        %v1764 = vpack.c.bf16 %v1704, %v1702
        %v1765 = vpack.c.bf16 %v1707, %v1705
        %v1766 = vpack.c.bf16 %v1708, %v1706
        %v1767 = vpack.c.bf16 %v1711, %v1709
        %v1768 = vpack.c.bf16 %v1712, %v1710
        %v1769 = vpack.c.bf16 %v1715, %v1713
        %v1770 = vpack.c.bf16 %v1716, %v1714
        %v1771 = vpack.c.bf16 %v1719, %v1717
        %v1772 = vpack.c.bf16 %v1720, %v1718
        %v1773 = vpack.c.bf16 %v1723, %v1721
        %v1774 = vpack.c.bf16 %v1724, %v1722
        %v1775 = vpack.c.bf16 %v1727, %v1725
        %v1776 = vpack.c.bf16 %v1728, %v1726
        %v1777 = vld [vmem:[%s303] sm:$0xff]
        %v1778 = vld [vmem:[%s303 + $0x8] sm:$0xff]
        %v1779 = vld [vmem:[%s303 + $0x10] sm:$0xff]
        %v1780 = vld [vmem:[%s303 + $0x18] sm:$0xff]
        %v1785 = vunpack.c.l.b16 %v1777
        %v1786 = vunpack.c.h.b16 %v1777
        %v1787 = vunpack.c.l.b16 %v1778
        %v1788 = vunpack.c.h.b16 %v1778
        %v1789 = vunpack.c.l.b16 %v1779
        %v1790 = vunpack.c.h.b16 %v1779
        %v1791 = vunpack.c.l.b16 %v1780
        %v1792 = vunpack.c.h.b16 %v1780
        %v1793 = vpack.c.b16 %v1787, %v1785
        %v1794 = vpack.c.b16 %v1788, %v1786
        %v1795 = vpack.c.b16 %v1791, %v1789
        %v1796 = vpack.c.b16 %v1792, %v1790
        %1801 = vmatpush.bf16.msra.mxu0 1065369472
        %1802 = vmatpush.bf16.msra.mxu0 1065369472
        %1803 = vmatpush.bf16.msra.mxu0 1065369472
        %1804 = vmatpush.bf16.msra.mxu0 1065369472
        %1805 = vmatpush.bf16.msra.mxu0 1065369472
        %1806 = vmatpush.bf16.msra.mxu0 1065369472
        %1807 = vmatpush.bf16.msra.mxu0 1065369472
        %1808 = vmatpush.bf16.msra.mxu0 1065369472
        %1809 = vmatmul.bf16.gmra.mxu0 %v1793
        %v1810 = vpop.f32.mrf.mxu0
        %v1811 = vadd.f32 0.0, %v1810
        %v1812 = vpop.f32.mrf.mxu0
        %v1813 = vadd.f32 0.0, %v1812
        %1814 = vmatmul.bf16.gmra.mxu0 %v1795
        %v1815 = vpop.f32.mrf.mxu0
        %v1816 = vadd.f32 0.0, %v1815
        %v1817 = vpop.f32.mrf.mxu0
        %v1818 = vadd.f32 0.0, %v1817
        %1819 = vdwg.mxu0
        %1820 = vmatpush.bf16.msra.mxu0 1065369472
        %1821 = vmatpush.bf16.msra.mxu0 1065369472
        %1822 = vmatpush.bf16.msra.mxu0 1065369472
        %1823 = vmatpush.bf16.msra.mxu0 1065369472
        %1824 = vmatpush.bf16.msra.mxu0 1065369472
        %1825 = vmatpush.bf16.msra.mxu0 1065369472
        %1826 = vmatpush.bf16.msra.mxu0 1065369472
        %1827 = vmatpush.bf16.msra.mxu0 1065369472
        %1828 = vmatmul.bf16.gmra.mxu0 %v1794
        %v1829 = vpop.f32.mrf.mxu0
        %v1830 = vadd.f32 %v1811, %v1829
        %v1831 = vpop.f32.mrf.mxu0
        %v1832 = vadd.f32 %v1813, %v1831
        %1833 = vmatmul.bf16.gmra.mxu0 %v1796
        %v1834 = vpop.f32.mrf.mxu0
        %v1835 = vadd.f32 %v1816, %v1834
        %v1836 = vpop.f32.mrf.mxu0
        %v1837 = vadd.f32 %v1818, %v1836
        %1838 = vdwg.mxu0
        %v1839 = vmul.f32 %v1830, 0.00390625
        %v1840 = vmul.f32 %v1832, 0.00390625
        %v1841 = vmul.f32 %v1835, 0.00390625
        %v1842 = vmul.f32 %v1837, 0.00390625
        %v1843 = vld [vmem:[%s4] sm:$0xf]
        %v1844 = vld [vmem:[%s4 + $0x4] sm:$0xf]
        %v1845 = vld [vmem:[%s4 + $0x8] sm:$0xf]
        %v1846 = vld [vmem:[%s4 + $0xc] sm:$0xf]
        %v1847 = vld [vmem:[%s4 + $0x10] sm:$0xf]
        %v1848 = vld [vmem:[%s4 + $0x14] sm:$0xf]
        %v1849 = vld [vmem:[%s4 + $0x18] sm:$0xf]
        %v1850 = vld [vmem:[%s4 + $0x1c] sm:$0xf]
        %v1851 = vpack.c.bf16 %v1840, %v1839
        %v1852 = vpack.c.bf16 %v1842, %v1841
        %v1853 = vld [vmem:[%s5] sm:$0xff]
        %v1854 = vld [vmem:[%s5 + $0x8] sm:$0xff]
        %v1855 = vld [vmem:[%s5 + $0x10] sm:$0xff]
        %v1856 = vld [vmem:[%s5 + $0x18] sm:$0xff]
        %v1857 = vld [vmem:[%s5 + $0x20] sm:$0xff]
        %v1858 = vld [vmem:[%s5 + $0x28] sm:$0xff]
        %v1859 = vld [vmem:[%s5 + $0x30] sm:$0xff]
        %v1860 = vld [vmem:[%s5 + $0x38] sm:$0xff]
        %v1869 = vunpack.c.l.b16 %v1843
        %v1870 = vunpack.c.l.b16 %v1844
        %v1871 = vunpack.c.l.b16 %v1845
        %v1872 = vunpack.c.l.b16 %v1846
        %v1873 = vunpack.c.l.b16 %v1847
        %v1874 = vunpack.c.l.b16 %v1848
        %v1875 = vunpack.c.l.b16 %v1849
        %v1876 = vunpack.c.l.b16 %v1850
        %v1877 = vpack.c.b16 %v1870, %v1869
        %v1878 = vpack.c.b16 %v1872, %v1871
        %v1879 = vpack.c.b16 %v1874, %v1873
        %v1880 = vpack.c.b16 %v1876, %v1875
        %v1882 = vsel %vm1018, %v1877, 0
        %v1885 = vsel %vm1018, %v1878, 0
        %v1888 = vsel %vm1018, %v1879, 0
        %v1891 = vsel %vm1018, %v1880, 0
        %1893 = vmatpush.bf16.msra.mxu0 0
        %1894 = vmatpush.bf16.msra.mxu0 0
        %1895 = vmatpush.bf16.msra.mxu0 0
        %1896 = vmatpush.bf16.msra.mxu0 0
        %1897 = vmatpush.bf16.msra.mxu0 0
        %1898 = vmatpush.bf16.msra.mxu0 0
        %1899 = vmatpush.bf16.msra.mxu0 %v1852
        %1900 = vmatpush.bf16.msra.mxu0 %v1851
        %1901 = vmatmul.bf16.gmra.mxu0 %v1882
        %v1902 = vpop.f32.mrf.mxu0
        %v1903 = vadd.f32 %v1853, %v1902
        %v1904 = vpop.f32.mrf.mxu0
        %v1905 = vadd.f32 %v1854, %v1904
        %1906 = vmatmul.bf16.gmra.mxu0 %v1885
        %v1907 = vpop.f32.mrf.mxu0
        %v1908 = vadd.f32 %v1855, %v1907
        %v1909 = vpop.f32.mrf.mxu0
        %v1910 = vadd.f32 %v1856, %v1909
        %1911 = vmatmul.bf16.gmra.mxu0 %v1888
        %v1912 = vpop.f32.mrf.mxu0
        %v1913 = vadd.f32 %v1857, %v1912
        %v1914 = vpop.f32.mrf.mxu0
        %v1915 = vadd.f32 %v1858, %v1914
        %1916 = vmatmul.bf16.gmra.mxu0 %v1891
        %v1917 = vpop.f32.mrf.mxu0
        %v1918 = vadd.f32 %v1859, %v1917
        %v1919 = vpop.f32.mrf.mxu0
        %v1920 = vadd.f32 %v1860, %v1919
        %1921 = vdwg.mxu0
        %v1922 = vmul.f32 %v1903, 0.01
        %v1923 = vmul.f32 %v1905, 0.01
        %v1924 = vmul.f32 %v1908, 0.01
        %v1925 = vmul.f32 %v1910, 0.01
        %v1926 = vmul.f32 %v1913, 0.01
        %v1927 = vmul.f32 %v1915, 0.01
        %v1928 = vmul.f32 %v1918, 0.01
        %v1929 = vmul.f32 %v1920, 0.01
        %v1930 = vmax.f32 %v1903, %v1922
        %v1931 = vmax.f32 %v1905, %v1923
        %v1932 = vmax.f32 %v1908, %v1924
        %v1933 = vmax.f32 %v1910, %v1925
        %v1934 = vmax.f32 %v1913, %v1926
        %v1935 = vmax.f32 %v1915, %v1927
        %v1936 = vmax.f32 %v1918, %v1928
        %v1937 = vmax.f32 %v1920, %v1929
        %v1938 = vld [vmem:[%s6] sm:$0xf]
        %v1939 = vld [vmem:[%s6 + $0x4] sm:$0xf]
        %v1940 = vld [vmem:[%s6 + $0x8] sm:$0xf]
        %v1941 = vld [vmem:[%s6 + $0xc] sm:$0xf]
        %v1942 = vld [vmem:[%s6 + $0x10] sm:$0xf]
        %v1943 = vld [vmem:[%s6 + $0x14] sm:$0xf]
        %v1944 = vld [vmem:[%s6 + $0x18] sm:$0xf]
        %v1945 = vld [vmem:[%s6 + $0x1c] sm:$0xf]
        %v1946 = vld [vmem:[%s6 + $0x20] sm:$0xf]
        %v1947 = vld [vmem:[%s6 + $0x24] sm:$0xf]
        %v1948 = vld [vmem:[%s6 + $0x28] sm:$0xf]
        %v1949 = vld [vmem:[%s6 + $0x2c] sm:$0xf]
        %v1950 = vld [vmem:[%s6 + $0x30] sm:$0xf]
        %v1951 = vld [vmem:[%s6 + $0x34] sm:$0xf]
        %v1952 = vld [vmem:[%s6 + $0x38] sm:$0xf]
        %v1953 = vld [vmem:[%s6 + $0x3c] sm:$0xf]
        %v1954 = vpack.c.bf16 %v1931, %v1930
        %v1955 = vpack.c.bf16 %v1933, %v1932
        %v1956 = vpack.c.bf16 %v1935, %v1934
        %v1957 = vpack.c.bf16 %v1937, %v1936
        %v1974 = vunpack.c.l.b16 %v1938
        %v1975 = vunpack.c.l.b16 %v1939
        %v1976 = vunpack.c.l.b16 %v1940
        %v1977 = vunpack.c.l.b16 %v1941
        %v1978 = vunpack.c.l.b16 %v1942
        %v1979 = vunpack.c.l.b16 %v1943
        %v1980 = vunpack.c.l.b16 %v1944
        %v1981 = vunpack.c.l.b16 %v1945
        %v1982 = vunpack.c.l.b16 %v1946
        %v1983 = vunpack.c.l.b16 %v1947
        %v1984 = vunpack.c.l.b16 %v1948
        %v1985 = vunpack.c.l.b16 %v1949
        %v1986 = vunpack.c.l.b16 %v1950
        %v1987 = vunpack.c.l.b16 %v1951
        %v1988 = vunpack.c.l.b16 %v1952
        %v1989 = vunpack.c.l.b16 %v1953
        %v1990 = vpack.c.b16 %v1975, %v1974
        %v1991 = vpack.c.b16 %v1977, %v1976
        %v1992 = vpack.c.b16 %v1979, %v1978
        %v1993 = vpack.c.b16 %v1981, %v1980
        %v1994 = vpack.c.b16 %v1983, %v1982
        %v1995 = vpack.c.b16 %v1985, %v1984
        %v1996 = vpack.c.b16 %v1987, %v1986
        %v1997 = vpack.c.b16 %v1989, %v1988
        %vm1998 = vcmask 523264
        %v2000 = vsel %vm1998, %v1990, 0
        %v2003 = vsel %vm1998, %v1991, 0
        %v2006 = vsel %vm1998, %v1992, 0
        %v2009 = vsel %vm1998, %v1993, 0
        %v2012 = vsel %vm1998, %v1994, 0
        %v2015 = vsel %vm1998, %v1995, 0
        %v2018 = vsel %vm1998, %v1996, 0
        %v2021 = vsel %vm1998, %v1997, 0
        %2023 = vmatpush.bf16.msra.mxu0 0
        %2024 = vmatpush.bf16.msra.mxu0 0
        %2025 = vmatpush.bf16.msra.mxu0 0
        %2026 = vmatpush.bf16.msra.mxu0 0
        %2027 = vmatpush.bf16.msra.mxu0 %v1957
        %2028 = vmatpush.bf16.msra.mxu0 %v1956
        %2029 = vmatpush.bf16.msra.mxu0 %v1955
        %2030 = vmatpush.bf16.msra.mxu0 %v1954
        %2031 = vmatmul.bf16.gmra.mxu0 %v2000
        %v2032 = vpop.f32.mrf.mxu0
        %v2033 = vadd.f32 0.0, %v2032
        %v2034 = vpop.f32.mrf.mxu0
        %v2035 = vadd.f32 0.0, %v2034
        %2036 = vmatmul.bf16.gmra.mxu0 %v2003
        %v2037 = vpop.f32.mrf.mxu0
        %v2038 = vadd.f32 0.0, %v2037
        %v2039 = vpop.f32.mrf.mxu0
        %v2040 = vadd.f32 0.0, %v2039
        %2041 = vmatmul.bf16.gmra.mxu0 %v2006
        %v2042 = vpop.f32.mrf.mxu0
        %v2043 = vadd.f32 0.0, %v2042
        %v2044 = vpop.f32.mrf.mxu0
        %v2045 = vadd.f32 0.0, %v2044
        %2046 = vmatmul.bf16.gmra.mxu0 %v2009
        %v2047 = vpop.f32.mrf.mxu0
        %v2048 = vadd.f32 0.0, %v2047
        %v2049 = vpop.f32.mrf.mxu0
        %v2050 = vadd.f32 0.0, %v2049
        %2051 = vmatmul.bf16.gmra.mxu0 %v2012
        %v2052 = vpop.f32.mrf.mxu0
        %v2053 = vadd.f32 0.0, %v2052
        %v2054 = vpop.f32.mrf.mxu0
        %v2055 = vadd.f32 0.0, %v2054
        %2056 = vmatmul.bf16.gmra.mxu0 %v2015
        %v2057 = vpop.f32.mrf.mxu0
        %v2058 = vadd.f32 0.0, %v2057
        %v2059 = vpop.f32.mrf.mxu0
        %v2060 = vadd.f32 0.0, %v2059
        %2061 = vmatmul.bf16.gmra.mxu0 %v2018
        %v2062 = vpop.f32.mrf.mxu0
        %v2063 = vadd.f32 0.0, %v2062
        %v2064 = vpop.f32.mrf.mxu0
        %v2065 = vadd.f32 0.0, %v2064
        %2066 = vmatmul.bf16.gmra.mxu0 %v2021
        %v2067 = vpop.f32.mrf.mxu0
        %v2068 = vadd.f32 0.0, %v2067
        %v2069 = vpop.f32.mrf.mxu0
        %v2070 = vadd.f32 0.0, %v2069
        %2071 = vdwg.mxu0
        %2073 = vset.pattern.permute.xlu0 0
        %2074 = vperm.xlu0 %2073, %v2033
        %v2075 = vpop.permute.xlu0 %2074
        %2078 = vset.pattern.permute.xlu0 0
        %2079 = vperm.xlu0 %2078, %v2035
        %v2080 = vpop.permute.xlu0 %2079
        %2083 = vset.pattern.permute.xlu0 0
        %2084 = vperm.xlu0 %2083, %v2038
        %v2085 = vpop.permute.xlu0 %2084
        %2088 = vset.pattern.permute.xlu0 0
        %2089 = vperm.xlu0 %2088, %v2040
        %v2090 = vpop.permute.xlu0 %2089
        %2093 = vset.pattern.permute.xlu0 0
        %2094 = vperm.xlu0 %2093, %v2043
        %v2095 = vpop.permute.xlu0 %2094
        %2098 = vset.pattern.permute.xlu0 0
        %2099 = vperm.xlu0 %2098, %v2045
        %v2100 = vpop.permute.xlu0 %2099
        %2103 = vset.pattern.permute.xlu0 0
        %2104 = vperm.xlu0 %2103, %v2048
        %v2105 = vpop.permute.xlu0 %2104
        %2108 = vset.pattern.permute.xlu0 0
        %2109 = vperm.xlu0 %2108, %v2050
        %v2110 = vpop.permute.xlu0 %2109
        %2113 = vset.pattern.permute.xlu0 0
        %2114 = vperm.xlu0 %2113, %v2053
        %v2115 = vpop.permute.xlu0 %2114
        %2118 = vset.pattern.permute.xlu0 0
        %2119 = vperm.xlu0 %2118, %v2055
        %v2120 = vpop.permute.xlu0 %2119
        %2123 = vset.pattern.permute.xlu0 0
        %2124 = vperm.xlu0 %2123, %v2058
        %v2125 = vpop.permute.xlu0 %2124
        %2128 = vset.pattern.permute.xlu0 0
        %2129 = vperm.xlu0 %2128, %v2060
        %v2130 = vpop.permute.xlu0 %2129
        %2133 = vset.pattern.permute.xlu0 0
        %2134 = vperm.xlu0 %2133, %v2063
        %v2135 = vpop.permute.xlu0 %2134
        %2138 = vset.pattern.permute.xlu0 0
        %2139 = vperm.xlu0 %2138, %v2065
        %v2140 = vpop.permute.xlu0 %2139
        %2143 = vset.pattern.permute.xlu0 0
        %2144 = vperm.xlu0 %2143, %v2068
        %v2145 = vpop.permute.xlu0 %2144
        %2148 = vset.pattern.permute.xlu0 0
        %2149 = vperm.xlu0 %2148, %v2070
        %v2150 = vpop.permute.xlu0 %2149
        %v2168 = vunpack.c.l.b16 %v1729
        %v2169 = vunpack.c.h.b16 %v1729
        %v2170 = vunpack.c.l.b16 %v1730
        %v2171 = vunpack.c.h.b16 %v1730
        %v2172 = vunpack.c.l.b16 %v1731
        %v2173 = vunpack.c.h.b16 %v1731
        %v2174 = vunpack.c.l.b16 %v1732
        %v2175 = vunpack.c.h.b16 %v1732
        %v2176 = vunpack.c.l.b16 %v1733
        %v2177 = vunpack.c.h.b16 %v1733
        %v2178 = vunpack.c.l.b16 %v1734
        %v2179 = vunpack.c.h.b16 %v1734
        %v2180 = vunpack.c.l.b16 %v1735
        %v2181 = vunpack.c.h.b16 %v1735
        %v2182 = vunpack.c.l.b16 %v1736
        %v2183 = vunpack.c.h.b16 %v1736
        %v2184 = vunpack.c.l.b16 %v1737
        %v2185 = vunpack.c.h.b16 %v1737
        %v2186 = vunpack.c.l.b16 %v1738
        %v2187 = vunpack.c.h.b16 %v1738
        %v2188 = vunpack.c.l.b16 %v1739
        %v2189 = vunpack.c.h.b16 %v1739
        %v2190 = vunpack.c.l.b16 %v1740
        %v2191 = vunpack.c.h.b16 %v1740
        %v2192 = vunpack.c.l.b16 %v1741
        %v2193 = vunpack.c.h.b16 %v1741
        %v2194 = vunpack.c.l.b16 %v1742
        %v2195 = vunpack.c.h.b16 %v1742
        %v2196 = vunpack.c.l.b16 %v1743
        %v2197 = vunpack.c.h.b16 %v1743
        %v2198 = vunpack.c.l.b16 %v1744
        %v2199 = vunpack.c.h.b16 %v1744
        %v2200 = vpack.c.b16 %v2170, %v2168
        %v2201 = vpack.c.b16 %v2171, %v2169
        %v2202 = vpack.c.b16 %v2174, %v2172
        %v2203 = vpack.c.b16 %v2175, %v2173
        %v2204 = vpack.c.b16 %v2178, %v2176
        %v2205 = vpack.c.b16 %v2179, %v2177
        %v2206 = vpack.c.b16 %v2182, %v2180
        %v2207 = vpack.c.b16 %v2183, %v2181
        %v2208 = vpack.c.b16 %v2186, %v2184
        %v2209 = vpack.c.b16 %v2187, %v2185
        %v2210 = vpack.c.b16 %v2190, %v2188
        %v2211 = vpack.c.b16 %v2191, %v2189
        %v2212 = vpack.c.b16 %v2194, %v2192
        %v2213 = vpack.c.b16 %v2195, %v2193
        %v2214 = vpack.c.b16 %v2198, %v2196
        %v2215 = vpack.c.b16 %v2199, %v2197
        %2232 = vmatpush.bf16.msra.mxu0 %v1759
        %2233 = vmatpush.bf16.msra.mxu0 %v1757
        %2234 = vmatpush.bf16.msra.mxu0 %v1755
        %2235 = vmatpush.bf16.msra.mxu0 %v1753
        %2236 = vmatpush.bf16.msra.mxu0 %v1751
        %2237 = vmatpush.bf16.msra.mxu0 %v1749
        %2238 = vmatpush.bf16.msra.mxu0 %v1747
        %2239 = vmatpush.bf16.msra.mxu0 %v1745
        %2240 = vmatmul.bf16.gmra.mxu0 %v2200
        %v2241 = vpop.f32.mrf.mxu0
        %v2242 = vadd.f32 %v2075, %v2241
        %v2243 = vpop.f32.mrf.mxu0
        %v2244 = vadd.f32 %v2080, %v2243
        %2245 = vmatmul.bf16.gmra.mxu0 %v2202
        %v2246 = vpop.f32.mrf.mxu0
        %v2247 = vadd.f32 %v2085, %v2246
        %v2248 = vpop.f32.mrf.mxu0
        %v2249 = vadd.f32 %v2090, %v2248
        %2250 = vmatmul.bf16.gmra.mxu0 %v2204
        %v2251 = vpop.f32.mrf.mxu0
        %v2252 = vadd.f32 %v2095, %v2251
        %v2253 = vpop.f32.mrf.mxu0
        %v2254 = vadd.f32 %v2100, %v2253
        %2255 = vmatmul.bf16.gmra.mxu0 %v2206
        %v2256 = vpop.f32.mrf.mxu0
        %v2257 = vadd.f32 %v2105, %v2256
        %v2258 = vpop.f32.mrf.mxu0
        %v2259 = vadd.f32 %v2110, %v2258
        %2260 = vmatmul.bf16.gmra.mxu0 %v2208
        %v2261 = vpop.f32.mrf.mxu0
        %v2262 = vadd.f32 %v2115, %v2261
        %v2263 = vpop.f32.mrf.mxu0
        %v2264 = vadd.f32 %v2120, %v2263
        %2265 = vmatmul.bf16.gmra.mxu0 %v2210
        %v2266 = vpop.f32.mrf.mxu0
        %v2267 = vadd.f32 %v2125, %v2266
        %v2268 = vpop.f32.mrf.mxu0
        %v2269 = vadd.f32 %v2130, %v2268
        %2270 = vmatmul.bf16.gmra.mxu0 %v2212
        %v2271 = vpop.f32.mrf.mxu0
        %v2272 = vadd.f32 %v2135, %v2271
        %v2273 = vpop.f32.mrf.mxu0
        %v2274 = vadd.f32 %v2140, %v2273
        %2275 = vmatmul.bf16.gmra.mxu0 %v2214
        %v2276 = vpop.f32.mrf.mxu0
        %v2277 = vadd.f32 %v2145, %v2276
        %v2278 = vpop.f32.mrf.mxu0
        %v2279 = vadd.f32 %v2150, %v2278
        %2280 = vdwg.mxu0
        %2281 = vmatpush.bf16.msra.mxu0 %v1775
        %2282 = vmatpush.bf16.msra.mxu0 %v1773
        %2283 = vmatpush.bf16.msra.mxu0 %v1771
        %2284 = vmatpush.bf16.msra.mxu0 %v1769
        %2285 = vmatpush.bf16.msra.mxu0 %v1767
        %2286 = vmatpush.bf16.msra.mxu0 %v1765
        %2287 = vmatpush.bf16.msra.mxu0 %v1763
        %2288 = vmatpush.bf16.msra.mxu0 %v1761
        %2289 = vmatmul.bf16.gmra.mxu0 %v2201
        %v2290 = vpop.f32.mrf.mxu0
        %v2291 = vadd.f32 %v2242, %v2290
        %v2292 = vpop.f32.mrf.mxu0
        %v2293 = vadd.f32 %v2244, %v2292
        %2294 = vmatmul.bf16.gmra.mxu0 %v2203
        %v2295 = vpop.f32.mrf.mxu0
        %v2296 = vadd.f32 %v2247, %v2295
        %v2297 = vpop.f32.mrf.mxu0
        %v2298 = vadd.f32 %v2249, %v2297
        %2299 = vmatmul.bf16.gmra.mxu0 %v2205
        %v2300 = vpop.f32.mrf.mxu0
        %v2301 = vadd.f32 %v2252, %v2300
        %v2302 = vpop.f32.mrf.mxu0
        %v2303 = vadd.f32 %v2254, %v2302
        %2304 = vmatmul.bf16.gmra.mxu0 %v2207
        %v2305 = vpop.f32.mrf.mxu0
        %v2306 = vadd.f32 %v2257, %v2305
        %v2307 = vpop.f32.mrf.mxu0
        %v2308 = vadd.f32 %v2259, %v2307
        %2309 = vmatmul.bf16.gmra.mxu0 %v2209
        %v2310 = vpop.f32.mrf.mxu0
        %v2311 = vadd.f32 %v2262, %v2310
        %v2312 = vpop.f32.mrf.mxu0
        %v2313 = vadd.f32 %v2264, %v2312
        %2314 = vmatmul.bf16.gmra.mxu0 %v2211
        %v2315 = vpop.f32.mrf.mxu0
        %v2316 = vadd.f32 %v2267, %v2315
        %v2317 = vpop.f32.mrf.mxu0
        %v2318 = vadd.f32 %v2269, %v2317
        %2319 = vmatmul.bf16.gmra.mxu0 %v2213
        %v2320 = vpop.f32.mrf.mxu0
        %v2321 = vadd.f32 %v2272, %v2320
        %v2322 = vpop.f32.mrf.mxu0
        %v2323 = vadd.f32 %v2274, %v2322
        %2324 = vmatmul.bf16.gmra.mxu0 %v2215
        %v2325 = vpop.f32.mrf.mxu0
        %v2326 = vadd.f32 %v2277, %v2325
        %v2327 = vpop.f32.mrf.mxu0
        %v2328 = vadd.f32 %v2279, %v2327
        %2329 = vdwg.mxu0
        %2330 = vmatpush.bf16.msra.mxu0 %v1760
        %2331 = vmatpush.bf16.msra.mxu0 %v1758
        %2332 = vmatpush.bf16.msra.mxu0 %v1756
        %2333 = vmatpush.bf16.msra.mxu0 %v1754
        %2334 = vmatpush.bf16.msra.mxu0 %v1752
        %2335 = vmatpush.bf16.msra.mxu0 %v1750
        %2336 = vmatpush.bf16.msra.mxu0 %v1748
        %2337 = vmatpush.bf16.msra.mxu0 %v1746
        %2338 = vmatmul.bf16.gmra.mxu0 %v2200
        %v2339 = vpop.f32.mrf.mxu0
        %v2340 = vadd.f32 %v2075, %v2339
        %v2341 = vpop.f32.mrf.mxu0
        %v2342 = vadd.f32 %v2080, %v2341
        %2343 = vmatmul.bf16.gmra.mxu0 %v2202
        %v2344 = vpop.f32.mrf.mxu0
        %v2345 = vadd.f32 %v2085, %v2344
        %v2346 = vpop.f32.mrf.mxu0
        %v2347 = vadd.f32 %v2090, %v2346
        %2348 = vmatmul.bf16.gmra.mxu0 %v2204
        %v2349 = vpop.f32.mrf.mxu0
        %v2350 = vadd.f32 %v2095, %v2349
        %v2351 = vpop.f32.mrf.mxu0
        %v2352 = vadd.f32 %v2100, %v2351
        %2353 = vmatmul.bf16.gmra.mxu0 %v2206
        %v2354 = vpop.f32.mrf.mxu0
        %v2355 = vadd.f32 %v2105, %v2354
        %v2356 = vpop.f32.mrf.mxu0
        %v2357 = vadd.f32 %v2110, %v2356
        %2358 = vmatmul.bf16.gmra.mxu0 %v2208
        %v2359 = vpop.f32.mrf.mxu0
        %v2360 = vadd.f32 %v2115, %v2359
        %v2361 = vpop.f32.mrf.mxu0
        %v2362 = vadd.f32 %v2120, %v2361
        %2363 = vmatmul.bf16.gmra.mxu0 %v2210
        %v2364 = vpop.f32.mrf.mxu0
        %v2365 = vadd.f32 %v2125, %v2364
        %v2366 = vpop.f32.mrf.mxu0
        %v2367 = vadd.f32 %v2130, %v2366
        %2368 = vmatmul.bf16.gmra.mxu0 %v2212
        %v2369 = vpop.f32.mrf.mxu0
        %v2370 = vadd.f32 %v2135, %v2369
        %v2371 = vpop.f32.mrf.mxu0
        %v2372 = vadd.f32 %v2140, %v2371
        %2373 = vmatmul.bf16.gmra.mxu0 %v2214
        %v2374 = vpop.f32.mrf.mxu0
        %v2375 = vadd.f32 %v2145, %v2374
        %v2376 = vpop.f32.mrf.mxu0
        %v2377 = vadd.f32 %v2150, %v2376
        %2378 = vdwg.mxu0
        %2379 = vmatpush.bf16.msra.mxu0 %v1776
        %2380 = vmatpush.bf16.msra.mxu0 %v1774
        %2381 = vmatpush.bf16.msra.mxu0 %v1772
        %2382 = vmatpush.bf16.msra.mxu0 %v1770
        %2383 = vmatpush.bf16.msra.mxu0 %v1768
        %2384 = vmatpush.bf16.msra.mxu0 %v1766
        %2385 = vmatpush.bf16.msra.mxu0 %v1764
        %2386 = vmatpush.bf16.msra.mxu0 %v1762
        %2387 = vmatmul.bf16.gmra.mxu0 %v2201
        %v2388 = vpop.f32.mrf.mxu0
        %v2389 = vadd.f32 %v2340, %v2388
        %v2390 = vpop.f32.mrf.mxu0
        %v2391 = vadd.f32 %v2342, %v2390
        %2392 = vmatmul.bf16.gmra.mxu0 %v2203
        %v2393 = vpop.f32.mrf.mxu0
        %v2394 = vadd.f32 %v2345, %v2393
        %v2395 = vpop.f32.mrf.mxu0
        %v2396 = vadd.f32 %v2347, %v2395
        %2397 = vmatmul.bf16.gmra.mxu0 %v2205
        %v2398 = vpop.f32.mrf.mxu0
        %v2399 = vadd.f32 %v2350, %v2398
        %v2400 = vpop.f32.mrf.mxu0
        %v2401 = vadd.f32 %v2352, %v2400
        %2402 = vmatmul.bf16.gmra.mxu0 %v2207
        %v2403 = vpop.f32.mrf.mxu0
        %v2404 = vadd.f32 %v2355, %v2403
        %v2405 = vpop.f32.mrf.mxu0
        %v2406 = vadd.f32 %v2357, %v2405
        %2407 = vmatmul.bf16.gmra.mxu0 %v2209
        %v2408 = vpop.f32.mrf.mxu0
        %v2409 = vadd.f32 %v2360, %v2408
        %v2410 = vpop.f32.mrf.mxu0
        %v2411 = vadd.f32 %v2362, %v2410
        %2412 = vmatmul.bf16.gmra.mxu0 %v2211
        %v2413 = vpop.f32.mrf.mxu0
        %v2414 = vadd.f32 %v2365, %v2413
        %v2415 = vpop.f32.mrf.mxu0
        %v2416 = vadd.f32 %v2367, %v2415
        %2417 = vmatmul.bf16.gmra.mxu0 %v2213
        %v2418 = vpop.f32.mrf.mxu0
        %v2419 = vadd.f32 %v2370, %v2418
        %v2420 = vpop.f32.mrf.mxu0
        %v2421 = vadd.f32 %v2372, %v2420
        %2422 = vmatmul.bf16.gmra.mxu0 %v2215
        %v2423 = vpop.f32.mrf.mxu0
        %v2424 = vadd.f32 %v2375, %v2423
        %v2425 = vpop.f32.mrf.mxu0
        %v2426 = vadd.f32 %v2377, %v2425
        %2427 = vdwg.mxu0
        %v2428 = vld [vmem:[%s7] sm:$0xff]
        %v2429 = vld [vmem:[%s7 + $0x8] sm:$0xff]
        %v2430 = vld [vmem:[%s7 + $0x10] sm:$0xff]
        %v2431 = vld [vmem:[%s7 + $0x18] sm:$0xff]
        %v2432 = vld [vmem:[%s7 + $0x20] sm:$0xff]
        %v2433 = vld [vmem:[%s7 + $0x28] sm:$0xff]
        %v2434 = vld [vmem:[%s7 + $0x30] sm:$0xff]
        %v2435 = vld [vmem:[%s7 + $0x38] sm:$0xff]
        %v2436 = vld [vmem:[%s7 + $0x40] sm:$0xff]
        %v2437 = vld [vmem:[%s7 + $0x48] sm:$0xff]
        %v2438 = vld [vmem:[%s7 + $0x50] sm:$0xff]
        %v2439 = vld [vmem:[%s7 + $0x58] sm:$0xff]
        %v2440 = vld [vmem:[%s7 + $0x60] sm:$0xff]
        %v2441 = vld [vmem:[%s7 + $0x68] sm:$0xff]
        %v2442 = vld [vmem:[%s7 + $0x70] sm:$0xff]
        %v2443 = vld [vmem:[%s7 + $0x78] sm:$0xff]
        %2445 = vset.pattern.permute.xlu0 0
        %2446 = vperm.xlu0 %2445, %v2428
        %v2447 = vpop.permute.xlu0 %2446
        %2450 = vset.pattern.permute.xlu0 0
        %2451 = vperm.xlu0 %2450, %v2429
        %v2452 = vpop.permute.xlu0 %2451
        %2455 = vset.pattern.permute.xlu0 0
        %2456 = vperm.xlu0 %2455, %v2430
        %v2457 = vpop.permute.xlu0 %2456
        %2460 = vset.pattern.permute.xlu0 0
        %2461 = vperm.xlu0 %2460, %v2431
        %v2462 = vpop.permute.xlu0 %2461
        %2465 = vset.pattern.permute.xlu0 0
        %2466 = vperm.xlu0 %2465, %v2432
        %v2467 = vpop.permute.xlu0 %2466
        %2470 = vset.pattern.permute.xlu0 0
        %2471 = vperm.xlu0 %2470, %v2433
        %v2472 = vpop.permute.xlu0 %2471
        %2475 = vset.pattern.permute.xlu0 0
        %2476 = vperm.xlu0 %2475, %v2434
        %v2477 = vpop.permute.xlu0 %2476
        %2480 = vset.pattern.permute.xlu0 0
        %2481 = vperm.xlu0 %2480, %v2435
        %v2482 = vpop.permute.xlu0 %2481
        %2485 = vset.pattern.permute.xlu0 0
        %2486 = vperm.xlu0 %2485, %v2436
        %v2487 = vpop.permute.xlu0 %2486
        %2490 = vset.pattern.permute.xlu0 0
        %2491 = vperm.xlu0 %2490, %v2437
        %v2492 = vpop.permute.xlu0 %2491
        %2495 = vset.pattern.permute.xlu0 0
        %2496 = vperm.xlu0 %2495, %v2438
        %v2497 = vpop.permute.xlu0 %2496
        %2500 = vset.pattern.permute.xlu0 0
        %2501 = vperm.xlu0 %2500, %v2439
        %v2502 = vpop.permute.xlu0 %2501
        %2505 = vset.pattern.permute.xlu0 0
        %2506 = vperm.xlu0 %2505, %v2440
        %v2507 = vpop.permute.xlu0 %2506
        %2510 = vset.pattern.permute.xlu0 0
        %2511 = vperm.xlu0 %2510, %v2441
        %v2512 = vpop.permute.xlu0 %2511
        %2515 = vset.pattern.permute.xlu0 0
        %2516 = vperm.xlu0 %2515, %v2442
        %v2517 = vpop.permute.xlu0 %2516
        %2520 = vset.pattern.permute.xlu0 0
        %2521 = vperm.xlu0 %2520, %v2443
        %v2522 = vpop.permute.xlu0 %2521
        %v2524 = vadd.f32 %v2291, %v2447
        %v2525 = vadd.f32 %v2389, %v2447
        %v2526 = vadd.f32 %v2293, %v2452
        %v2527 = vadd.f32 %v2391, %v2452
        %v2528 = vadd.f32 %v2296, %v2457
        %v2529 = vadd.f32 %v2394, %v2457
        %v2530 = vadd.f32 %v2298, %v2462
        %v2531 = vadd.f32 %v2396, %v2462
        %v2532 = vadd.f32 %v2301, %v2467
        %v2533 = vadd.f32 %v2399, %v2467
        %v2534 = vadd.f32 %v2303, %v2472
        %v2535 = vadd.f32 %v2401, %v2472
        %v2536 = vadd.f32 %v2306, %v2477
        %v2537 = vadd.f32 %v2404, %v2477
        %v2538 = vadd.f32 %v2308, %v2482
        %v2539 = vadd.f32 %v2406, %v2482
        %v2540 = vadd.f32 %v2311, %v2487
        %v2541 = vadd.f32 %v2409, %v2487
        %v2542 = vadd.f32 %v2313, %v2492
        %v2543 = vadd.f32 %v2411, %v2492
        %v2544 = vadd.f32 %v2316, %v2497
        %v2545 = vadd.f32 %v2414, %v2497
        %v2546 = vadd.f32 %v2318, %v2502
        %v2547 = vadd.f32 %v2416, %v2502
        %v2548 = vadd.f32 %v2321, %v2507
        %v2549 = vadd.f32 %v2419, %v2507
        %v2550 = vadd.f32 %v2323, %v2512
        %v2551 = vadd.f32 %v2421, %v2512
        %v2552 = vadd.f32 %v2326, %v2517
        %v2553 = vadd.f32 %v2424, %v2517
        %v2554 = vadd.f32 %v2328, %v2522
        %v2555 = vadd.f32 %v2426, %v2522
        %v2556 = vmul.f32 %v2524, 0.01
        %v2557 = vmul.f32 %v2525, 0.01
        %v2558 = vmul.f32 %v2526, 0.01
        %v2559 = vmul.f32 %v2527, 0.01
        %v2560 = vmul.f32 %v2528, 0.01
        %v2561 = vmul.f32 %v2529, 0.01
        %v2562 = vmul.f32 %v2530, 0.01
        %v2563 = vmul.f32 %v2531, 0.01
        %v2564 = vmul.f32 %v2532, 0.01
        %v2565 = vmul.f32 %v2533, 0.01
        %v2566 = vmul.f32 %v2534, 0.01
        %v2567 = vmul.f32 %v2535, 0.01
        %v2568 = vmul.f32 %v2536, 0.01
        %v2569 = vmul.f32 %v2537, 0.01
        %v2570 = vmul.f32 %v2538, 0.01
        %v2571 = vmul.f32 %v2539, 0.01
        %v2572 = vmul.f32 %v2540, 0.01
        %v2573 = vmul.f32 %v2541, 0.01
        %v2574 = vmul.f32 %v2542, 0.01
        %v2575 = vmul.f32 %v2543, 0.01
        %v2576 = vmul.f32 %v2544, 0.01
        %v2577 = vmul.f32 %v2545, 0.01
        %v2578 = vmul.f32 %v2546, 0.01
        %v2579 = vmul.f32 %v2547, 0.01
        %v2580 = vmul.f32 %v2548, 0.01
        %v2581 = vmul.f32 %v2549, 0.01
        %v2582 = vmul.f32 %v2550, 0.01
        %v2583 = vmul.f32 %v2551, 0.01
        %v2584 = vmul.f32 %v2552, 0.01
        %v2585 = vmul.f32 %v2553, 0.01
        %v2586 = vmul.f32 %v2554, 0.01
        %v2587 = vmul.f32 %v2555, 0.01
        %v2588 = vmax.f32 %v2524, %v2556
        %v2589 = vmax.f32 %v2525, %v2557
        %v2590 = vmax.f32 %v2526, %v2558
        %v2591 = vmax.f32 %v2527, %v2559
        %v2592 = vmax.f32 %v2528, %v2560
        %v2593 = vmax.f32 %v2529, %v2561
        %v2594 = vmax.f32 %v2530, %v2562
        %v2595 = vmax.f32 %v2531, %v2563
        %v2596 = vmax.f32 %v2532, %v2564
        %v2597 = vmax.f32 %v2533, %v2565
        %v2598 = vmax.f32 %v2534, %v2566
        %v2599 = vmax.f32 %v2535, %v2567
        %v2600 = vmax.f32 %v2536, %v2568
        %v2601 = vmax.f32 %v2537, %v2569
        %v2602 = vmax.f32 %v2538, %v2570
        %v2603 = vmax.f32 %v2539, %v2571
        %v2604 = vmax.f32 %v2540, %v2572
        %v2605 = vmax.f32 %v2541, %v2573
        %v2606 = vmax.f32 %v2542, %v2574
        %v2607 = vmax.f32 %v2543, %v2575
        %v2608 = vmax.f32 %v2544, %v2576
        %v2609 = vmax.f32 %v2545, %v2577
        %v2610 = vmax.f32 %v2546, %v2578
        %v2611 = vmax.f32 %v2547, %v2579
        %v2612 = vmax.f32 %v2548, %v2580
        %v2613 = vmax.f32 %v2549, %v2581
        %v2614 = vmax.f32 %v2550, %v2582
        %v2615 = vmax.f32 %v2551, %v2583
        %v2616 = vmax.f32 %v2552, %v2584
        %v2617 = vmax.f32 %v2553, %v2585
        %v2618 = vmax.f32 %v2554, %v2586
        %v2619 = vmax.f32 %v2555, %v2587
        %2620 = vst [vmem:[%s298] sm:$0xff] %v2588
        %2621 = vst [vmem:[%s298 + $0x8] sm:$0xff] %v2589
        %2622 = vst [vmem:[%s298 + $0x10] sm:$0xff] %v2590
        %2623 = vst [vmem:[%s298 + $0x18] sm:$0xff] %v2591
        %2624 = vst [vmem:[%s298 + $0x20] sm:$0xff] %v2592
        %2625 = vst [vmem:[%s298 + $0x28] sm:$0xff] %v2593
        %2626 = vst [vmem:[%s298 + $0x30] sm:$0xff] %v2594
        %2627 = vst [vmem:[%s298 + $0x38] sm:$0xff] %v2595
        %2628 = vst [vmem:[%s298 + $0x40] sm:$0xff] %v2596
        %2629 = vst [vmem:[%s298 + $0x48] sm:$0xff] %v2597
        %2630 = vst [vmem:[%s298 + $0x50] sm:$0xff] %v2598
        %2631 = vst [vmem:[%s298 + $0x58] sm:$0xff] %v2599
        %2632 = vst [vmem:[%s298 + $0x60] sm:$0xff] %v2600
        %2633 = vst [vmem:[%s298 + $0x68] sm:$0xff] %v2601
        %2634 = vst [vmem:[%s298 + $0x70] sm:$0xff] %v2602
        %2635 = vst [vmem:[%s298 + $0x78] sm:$0xff] %v2603
        %2636 = vst [vmem:[%s298 + $0x80] sm:$0xff] %v2604
        %2637 = vst [vmem:[%s298 + $0x88] sm:$0xff] %v2605
        %2638 = vst [vmem:[%s298 + $0x90] sm:$0xff] %v2606
        %2639 = vst [vmem:[%s298 + $0x98] sm:$0xff] %v2607
        %2640 = vst [vmem:[%s298 + $0xa0] sm:$0xff] %v2608
        %2641 = vst [vmem:[%s298 + $0xa8] sm:$0xff] %v2609
        %2642 = vst [vmem:[%s298 + $0xb0] sm:$0xff] %v2610
        %2643 = vst [vmem:[%s298 + $0xb8] sm:$0xff] %v2611
        %2644 = vst [vmem:[%s298 + $0xc0] sm:$0xff] %v2612
        %2645 = vst [vmem:[%s298 + $0xc8] sm:$0xff] %v2613
        %2646 = vst [vmem:[%s298 + $0xd0] sm:$0xff] %v2614
        %2647 = vst [vmem:[%s298 + $0xd8] sm:$0xff] %v2615
        %2648 = vst [vmem:[%s298 + $0xe0] sm:$0xff] %v2616
        %2649 = vst [vmem:[%s298 + $0xe8] sm:$0xff] %v2617
        %2650 = vst [vmem:[%s298 + $0xf0] sm:$0xff] %v2618
        %2651 = vst [vmem:[%s298 + $0xf8] sm:$0xff] %v2619
        %s2652 = sand.u32 %s203, 1
        %s2653 = scalar_lea.sflag [#allocation3], %s2652
        %s2654 = sand.u32 %s203, 1
        %s2655 = smul.addr %s2654, 256
        %s2656 = scalar_lea.vmem [#allocation2], %s2655
        // Predicated region
        $region53: #{tpu_custom_call.1} parent=51 // pred_check
          %p2657 = pneg %p213
        $region54: #{tpu_custom_call.1} parent=51 // pred_check_branch
          %2659 = sbr.rel (%p2657) target = $region56
        $region55: #{tpu_custom_call.1} parent=51 // pred_region
          %2661 = vsyncadd %s2653, 0
          %s2662 = smul.addr %s22, 32
          %s2663 = smul.addr %s2662, 8
          %s2664 = scalar_lea.hbm %s8, %s2663
          %s2665 = sshll.u32 %s2656, 4
          %s2666 = int_to_ptr.vmem [resolvable:$true] %s2665
          %s2667 = sshll.u32 %s2664, 4
          %s2668 = int_to_ptr.hbm [resolvable:$true] %s2667
          %2673 = dma.vmem_to_hbm [thread:$0]  %s2666, 4096, %s2668, %s2653, 256, 256, 16
        $region56: #{tpu_custom_call.1} parent=51 // pred_fallthru
          _
      $region52: #{tpu_custom_call.1} parent=5 // pred_fallthru
        _
      %p2674 = scmp.le.s32.totalorder 2, %s17
      // Predicated region
      $region57: #{tpu_custom_call.1} parent=5 // pred_check
        %p2675 = pneg %p2674
      $region58: #{tpu_custom_call.1} parent=5 // pred_check_branch
        %2677 = sbr.rel (%p2675) target = $region60
      $region59: #{tpu_custom_call.1} parent=5 // pred_region
        %s2678 = ssub.s32 %s17, 2
        // Predicated region
        $region61: #{tpu_custom_call.1} parent=59 // pred_check
          %p2679 = pneg %p219
        $region62: #{tpu_custom_call.1} parent=59 // pred_check_branch
          %2681 = sbr.rel (%p2679) target = $region64
        $region63: #{tpu_custom_call.1} parent=59 // pred_region
          %s2682 = sand.u32 %s204, 1
          %s2683 = scalar_lea.sflag [#allocation3], %s2682
          %s2684 = sand.u32 %s204, 1
          %s2685 = smul.addr %s2684, 256
          %s2686 = scalar_lea.vmem [#allocation2], %s2685
          %2688 = dma.done %s2683, 4096
        $region64: #{tpu_custom_call.1} parent=59 // pred_fallthru
          _
      $region60: #{tpu_custom_call.1} parent=5 // pred_fallthru
        _
    $region6: #{tpu_custom_call.1} parent=1 // loop_footer
      %s21 = sadd.s32 1, %s17
    $region7: #{tpu_custom_call.1} parent=1 // loop_footer_branch
      %16 = sbr.rel target = $region3
    $region8: #{tpu_custom_call.1} parent=1 // loop_exit
      _
    %2689 = vsyncpa [#allocation3], 1
    %s2690 = scalar_lea.sflag [#allocation3], 1
    %2691 = vsyncpa %s2690, 1

</llo_original>
